<compile_context>
chip_gen: v6e
topology: v6e:2x2x1
jax: 0.10.0
libtpu: 0.0.40
codegen_flags: <defaults>
</compile_context>

<pallas_src>
import functools

import jax
import jax.numpy as jnp
import numpy as np
from jax.experimental import pallas as pl
from jax.experimental.pallas import tpu as pltpu


def _round_up(x: int, m: int) -> int:
    return ((x + m - 1) // m) * m


# --------------------------------------------------------------------------- #
# Kernel 1: one-shot prep.  Builds the reflect-padded 9-tap im2col slab (bf16,
# lane-dense) and, with the style tile already resident in VMEM, computes the
# AdaptiveAvgPool + fused [pointwise-kernel | bias] predictor output.
# --------------------------------------------------------------------------- #
def _prep_kernel(x_ref, wpwb_ref, bpwb_ref, slab_ref, pwb_ref):
    """
    x_ref    : (B, H, W, Kp)  f32   NHWC style tile (Kp = padded style_dim)
    wpwb_ref : (Kp, Npwb)     bf16  fused [pointwise-kernel | bias] 1x1 weights
    bpwb_ref : (1, Npwb)      f32   fused conv biases
    slab_ref : (M, 9*Kp)      bf16  im2col slab; rows = (b, y, x) row-major,
                                    cols = tap-major (tap*Kp + style channel)
    pwb_ref  : (B, Npwb)      f32   pooled fused output
    """
    B, H, W, K = x_ref.shape
    M = B * H * W
    x = x_ref[...]                                                       # f32

    # ReflectionPad2d(pad=1) built in VMEM from the resident tile:
    # padded row -1 -> row 1, padded row H -> row H-2 (same for columns).
    xr = jnp.concatenate([x[:, 1:2], x, x[:, H - 2:H - 1]], axis=1)            # (B,H+2,W,K)
    xp = jnp.concatenate([xr[:, :, 1:2], xr, xr[:, :, W - 2:W - 1]], axis=2)   # (B,H+2,W+2,K)

    # 9-tap im2col slab, written once; the N-tiled matmul kernel reuses it.
    taps = []
    for tap in range(9):
        dy, dx = tap // 3, tap % 3
        taps.append(xp[:, dy:dy + H, dx:dx + W, :].reshape(M, K))
    slab_ref[...] = jnp.concatenate(taps, axis=1).astype(slab_ref.dtype)

    # AdaptiveAvgPool2d((1,1)) + fused [pointwise-kernel | bias] 1x1-conv predictor.
    pooled = jnp.sum(x.reshape(B, H * W, K), axis=1) * (1.0 / (H * W))         # (B,K) f32
    pwb_ref[...] = (jnp.dot(pooled.astype(wpwb_ref.dtype), wpwb_ref[...],
                            preferred_element_type=jnp.float32)
                    + bpwb_ref[...])


# --------------------------------------------------------------------------- #
# Kernel 2: depthwise-kernel predictor = ONE long-K matmul per output-channel
# block.  (M, 9*Kp) bf16  x  (9*Kp, n_tile) bf16  ->  (M, n_tile) f32.
# Every grid step is independent -> the grid axis is "parallel" (v7x megacore).
# --------------------------------------------------------------------------- #
def _dw_matmul_kernel(slab_ref, wdw_ref, bdw_ref, out_ref):
    out_ref[...] = (jnp.dot(slab_ref[...], wdw_ref[...],
                            preferred_element_type=jnp.float32)
                    + bdw_ref[...])


# --------------------------------------------------------------------------- #
# One-time parameter repacking (hoisted out of the per-call forward path).
# --------------------------------------------------------------------------- #
def pack_kernel_predictor_params(params, *, style_dim, in_channels, out_channels,
                                 groups):
    """Repack PyTorch-layout parameters into the kernel's lane-dense layouts.

    Call once and reuse the result for every forward invocation.
    params: dw_w (C_dw, S, 3, 3), dw_b (C_dw,), pw_w (C_pw, S, 1, 1), pw_b (C_pw,),
            bias_w (out_channels, S, 1, 1), bias_b (out_channels,)
    """
    f32, bf16 = jnp.float32, jnp.bfloat16
    S = style_dim
    c_dw = out_channels * (in_channels // groups)
    c_pw = out_channels * (out_channels // groups)
    c_pwb = c_pw + out_channels

    Kp = _round_up(S, 128)       # contraction dim per tap, lane-aligned
    Ndw = _round_up(c_dw, 128)   # depthwise-predictor output channels
    Npwb = _round_up(c_pwb, 128)  # fused pointwise+bias output width

    # Depthwise-kernel predictor conv weights: (C_dw, S, 3, 3) -> (9*Kp, Ndw),
    # rows tap-major / style-channel-minor to match the im2col slab columns.
    dw_w = jnp.transpose(params["dw_w"].astype(f32), (2, 3, 1, 0)).reshape(9, S, c_dw)
    dw_w = jnp.pad(dw_w, ((0, 0), (0, Kp - S), (0, Ndw - c_dw)))
    dw_w = dw_w.reshape(9 * Kp, Ndw).astype(bf16)
    dw_b = jnp.pad(params["dw_b"].astype(f32), (0, Ndw - c_dw)).reshape(1, Ndw)

    # Fused [pointwise-kernel | bias] predictor (both are 1x1 convs on the pooled map).
    pw_w = params["pw_w"].astype(f32).reshape(c_pw, S).T                  # (S, C_pw)
    bias_w = params["bias_w"].astype(f32).reshape(out_channels, S).T      # (S, out)
    wpwb = jnp.concatenate([pw_w, bias_w], axis=1)                        # (S, C_pw+out)
    wpwb = jnp.pad(wpwb, ((0, Kp - S), (0, Npwb - c_pwb))).astype(bf16)
    bpwb = jnp.concatenate([params["pw_b"].astype(f32),
                            params["bias_b"].astype(f32)])
    bpwb = jnp.pad(bpwb, (0, Npwb - c_pwb)).reshape(1, Npwb)

    return {"dw_w": dw_w, "dw_b": dw_b, "wpwb": wpwb, "bpwb": bpwb}


# --------------------------------------------------------------------------- #
# Forward (matches KernelPredictor.forward).
# --------------------------------------------------------------------------- #
def kernel_predictor_forward(w, packed, *, in_channels, out_channels, groups,
                             style_kernel, fixed_batch_size=None,
                             n_tile=None, interpret=False):
    """w: (B, style_dim, H, W) f32 style maps (NCHW, H == W == style_kernel).
    packed: output of pack_kernel_predictor_params.
    Returns (dw_kernel, pw_kernel, bias) with the PyTorch output shapes."""
    f32 = jnp.float32
    B, S, H, W = w.shape
    assert H == style_kernel and W == style_kernel
    assert style_kernel >= 2, "ReflectionPad2d(1) requires spatial size >= 2"
    Bv = fixed_batch_size if fixed_batch_size is not None else B

    c_dw = out_channels * (in_channels // groups)
    c_pw = out_channels * (out_channels // groups)
    c_pwb = c_pw + out_channels

    nine_kp, Ndw = packed["dw_w"].shape
    Kp = nine_kp // 9
    Npwb = packed["wpwb"].shape[1]
    assert Kp >= S and Ndw >= c_dw and Npwb >= c_pwb
    M = B * H * W

    # Activation layout plumbing only (parameters are pre-packed once).
    x = jnp.transpose(w.astype(f32), (0, 2, 3, 1))              # NHWC, lane = style_dim
    x = jnp.pad(x, ((0, 0), (0, 0), (0, 0), (0, Kp - S)))

    # ---- one-shot prep: im2col slab + pooled pointwise/bias predictor ----
    slab, pwb = pl.pallas_call(
        _prep_kernel,
        out_shape=(jax.ShapeDtypeStruct((M, 9 * Kp), jnp.bfloat16),
                   jax.ShapeDtypeStruct((B, Npwb), f32)),
        grid_spec=pltpu.PrefetchScalarGridSpec(
            num_scalar_prefetch=0,
            grid=(1,),
            in_specs=[
                pl.BlockSpec((B, H, W, Kp), lambda i: (0, 0, 0, 0)),
                pl.BlockSpec((Kp, Npwb), lambda i: (0, 0)),
                pl.BlockSpec((1, Npwb), lambda i: (0, 0)),
            ],
            out_specs=(
                pl.BlockSpec((M, 9 * Kp), lambda i: (0, 0)),
                pl.BlockSpec((B, Npwb), lambda i: (0, 0)),
            ),
        ),
        compiler_params=pltpu.CompilerParams(
            dimension_semantics=("arbitrary",)),
        interpret=interpret,
    )(x, packed["wpwb"], packed["bpwb"])

    # ---- N-tiled depthwise-kernel-predictor matmul ----
    if n_tile is None:
        n_tile = next(t for t in (512, 256, 128) if Ndw % t == 0)
    assert Ndw % n_tile == 0, "n_tile must divide the padded output-channel count"
    n_blocks = Ndw // n_tile

    wdw_bufs = 3 if n_blocks >= 3 else 2
    if wdw_bufs == 3:
        # Deeper weight pipelining once there are enough blocks to overlap.
        wdw_spec = pl.BlockSpec((9 * Kp, n_tile), lambda j: (0, j),
                                pipeline_mode=pl.Buffered(3))
    else:
        wdw_spec = pl.BlockSpec((9 * Kp, n_tile), lambda j: (0, j))

    step_bytes = (2 * M * 9 * Kp * 2                   # resident bf16 slab (count 2 buffers)
                  + wdw_bufs * 9 * Kp * n_tile * 2     # bf16 weight tiles
                  + 2 * 8 * n_tile * 4                 # bias row (padded sublanes)
                  + 2 * M * n_tile * 4)                # f32 output tiles
    vmem_limit = int(min(max(step_bytes + (8 << 20), 32 << 20), 112 << 20))
    # TODO(synk): for very large B (M = B*style_kernel^2) also tile the M axis so the
    # slab / output blocks stay within v7x's 64 MiB VMEM; not needed at demo sizes.

    dw_flat = pl.pallas_call(
        _dw_matmul_kernel,
        out_shape=jax.ShapeDtypeStruct((M, Ndw), f32),
        grid_spec=pltpu.PrefetchScalarGridSpec(
            num_scalar_prefetch=0,
            grid=(n_blocks,),
            in_specs=[
                pl.BlockSpec((M, 9 * Kp), lambda j: (0, 0)),   # slab stays resident
                wdw_spec,
                pl.BlockSpec((1, n_tile), lambda j: (0, j)),
            ],
            out_specs=pl.BlockSpec((M, n_tile), lambda j: (0, j)),
        ),
        compiler_params=pltpu.CompilerParams(
            dimension_semantics=("parallel",),        # safe: no grid-invariant outputs
            vmem_limit_bytes=vmem_limit),
        interpret=interpret,
    )(slab, packed["dw_w"], packed["dw_b"])

    # ---- back to the PyTorch output layouts (plain JAX glue) ----
    # (Downstream consumers that accept the channel-minor layout can skip this.)
    dw = dw_flat[:, :c_dw].reshape(B, H, W, c_dw)
    dw = jnp.transpose(dw, (0, 3, 1, 2)).reshape(
        Bv, out_channels, in_channels // groups, style_kernel, style_kernel)
    pw = pwb[:, :c_pw].reshape(Bv, out_channels, out_channels // groups, 1, 1)
    bias = pwb[:, c_pw:c_pwb].reshape(-1)
    return dw, pw, bias


# ------------------------------ numpy f64 reference ------------------------------
def _reference_numpy(w, params, *, in_channels, out_channels, groups, style_kernel):
    w = np.asarray(w, np.float64)
    B, S, H, W = w.shape
    dw_w = np.asarray(params["dw_w"], np.float64)
    dw_b = np.asarray(params["dw_b"], np.float64)
    pw_w = np.asarray(params["pw_w"], np.float64).reshape(-1, S)
    pw_b = np.asarray(params["pw_b"], np.float64)
    bias_w = np.asarray(params["bias_w"], np.float64).reshape(-1, S)
    bias_b = np.asarray(params["bias_b"], np.float64)

    wp = np.pad(w, ((0, 0), (0, 0), (1, 1), (1, 1)), mode="reflect")
    c_dw = dw_w.shape[0]
    out = np.zeros((B, c_dw, H, W), np.float64)
    for ky in range(3):
        for kx in range(3):
            patch = wp[:, :, ky:ky + H, kx:kx + W]
            out += np.einsum("bshw,os->bohw", patch, dw_w[:, :, ky, kx])
    out += dw_b[None, :, None, None]
    dw_kernel = out.reshape(B, out_channels, in_channels // groups,
                            style_kernel, style_kernel)

    pooled = w.mean(axis=(2, 3))                         # (B, S)
    pw_kernel = (pooled @ pw_w.T + pw_b).reshape(
        B, out_channels, out_channels // groups, 1, 1)
    bias = (pooled @ bias_w.T + bias_b).reshape(-1)
    return dw_kernel, pw_kernel, bias


if __name__ == "__main__":
    B = 2
    style_dim = 128
    in_channels = 16
    out_channels = 16
    groups = 4
    style_kernel = 8

    c_dw = out_channels * (in_channels // groups)
    c_pw = out_channels * (out_channels // groups)

    key = jax.random.PRNGKey(0)
    ks = jax.random.split(key, 7)
    w = jax.random.normal(ks[0], (B, style_dim, style_kernel, style_kernel), jnp.float32)
    params = {
        "dw_w": 0.05 * jax.random.normal(ks[1], (c_dw, style_dim, 3, 3), jnp.float32),
        "dw_b": 0.05 * jax.random.normal(ks[2], (c_dw,), jnp.float32),
        "pw_w": 0.05 * jax.random.normal(ks[3], (c_pw, style_dim, 1, 1), jnp.float32),
        "pw_b": 0.05 * jax.random.normal(ks[4], (c_pw,), jnp.float32),
        "bias_w": 0.05 * jax.random.normal(ks[5], (out_channels, style_dim, 1, 1), jnp.float32),
        "bias_b": 0.05 * jax.random.normal(ks[6], (out_channels,), jnp.float32),
    }

    # One-time parameter repacking, outside the per-call forward path.
    packed = pack_kernel_predictor_params(
        params, style_dim=style_dim, in_channels=in_channels,
        out_channels=out_channels, groups=groups)
    packed = jax.tree_util.tree_map(jax.block_until_ready, packed)

    fwd = jax.jit(functools.partial(
        kernel_predictor_forward,
        in_channels=in_channels, out_channels=out_channels,
        groups=groups, style_kernel=style_kernel))

    dw_k, pw_k, bias = fwd(w, packed)
    jax.block_until_ready((dw_k, pw_k, bias))

    dw_ref, pw_ref, b_ref = _reference_numpy(
        w, params, in_channels=in_channels, out_channels=out_channels,
        groups=groups, style_kernel=style_kernel)
    # bf16 MXU operands with f32 accumulation -> 2e-2 tolerance.
    np.testing.assert_allclose(np.asarray(dw_k, np.float64), dw_ref, rtol=2e-2, atol=2e-2)
    np.testing.assert_allclose(np.asarray(pw_k, np.float64), pw_ref, rtol=2e-2, atol=2e-2)
    np.testing.assert_allclose(np.asarray(bias, np.float64), b_ref, rtol=2e-2, atol=2e-2)

    print("KERNEL_OK")
</pallas_src>

<mosaic_0001>
module attributes {stable_mosaic.version = 11 : i64} {
  func.func @_dw_matmul_kernel(%arg0: i32, %arg1: memref<128x1152xbf16, #tpu.memory_space<vmem>>, %arg2: memref<1152x128xbf16, #tpu.memory_space<vmem>>, %arg3: memref<1x128xf32, #tpu.memory_space<vmem>>, %arg4: memref<128x128xf32, #tpu.memory_space<vmem>>) attributes {dimension_semantics = [#tpu.dimension_semantics<parallel>], iteration_bounds = array<i64: 1>, scalar_prefetch = 0 : i64, scratch_operands = 0 : i64, tpu.core_type = #tpu.core_type<tc>, window_params = [{pipeline_mode = #tpu.pipeline_mode<synchronous>, transform_indices = @transform_0, window_bounds = array<i64: 128, 1152>}, {transform_indices = @transform_1, window_bounds = array<i64: 1152, 128>}, {transform_indices = @transform_2, window_bounds = array<i64: 1, 128>}, {transform_indices = @transform_3, window_bounds = array<i64: 128, 128>}]} {
    %c0 = arith.constant 0 : index
    %c0_0 = arith.constant 0 : index
    %0 = vector.load %arg1[%c0, %c0_0] : memref<128x1152xbf16, #tpu.memory_space<vmem>>, vector<128x1152xbf16>
    %c0_1 = arith.constant 0 : index
    %c0_2 = arith.constant 0 : index
    %1 = vector.load %arg2[%c0_1, %c0_2] : memref<1152x128xbf16, #tpu.memory_space<vmem>>, vector<1152x128xbf16>
    %cst = arith.constant dense<0.000000e+00> : vector<128x128xf32>
    %2 = tpu.matmul %0, %1, %cst {dimension_numbers = #tpu.dot_dimension_numbers<[1], [0], [0], [1], [0, 0, 1, 1], [], []>} : vector<128x1152xbf16>, vector<1152x128xbf16>, vector<128x128xf32> -> vector<128x128xf32>
    %c0_3 = arith.constant 0 : index
    %c0_4 = arith.constant 0 : index
    %3 = vector.load %arg3[%c0_3, %c0_4] : memref<1x128xf32, #tpu.memory_space<vmem>>, vector<1x128xf32>
    %4 = vector.broadcast %3 : vector<1x128xf32> to vector<128x128xf32>
    %5 = arith.addf %2, %4 : vector<128x128xf32>
    %c0_5 = arith.constant 0 : index
    %c0_6 = arith.constant 0 : index
    %6 = vector.load %arg4[%c0_5, %c0_6] : memref<128x128xf32, #tpu.memory_space<vmem>>, vector<128x128xf32>
    tpu.vector_store %arg4[%c0_5, %c0_6], %5 {strides = array<i32>} : memref<128x128xf32, #tpu.memory_space<vmem>>, vector<128x128xf32>,
    return
  }
  func.func @transform_0(%arg0: i32) -> (i32, i32) {
    %c0_i32 = arith.constant 0 : i32
    %c0_i32_0 = arith.constant 0 : i32
    %c0_i32_1 = arith.constant 0 : i32
    return %c0_i32, %c0_i32_0 : i32, i32
  }
  func.func @transform_1(%arg0: i32) -> (i32, i32) {
    %c0_i32 = arith.constant 0 : i32
    %c0_i32_0 = arith.constant 0 : i32
    return %c0_i32, %arg0 : i32, i32
  }
  func.func @transform_2(%arg0: i32) -> (i32, i32) {
    %c0_i32 = arith.constant 0 : i32
    %c0_i32_0 = arith.constant 0 : i32
    return %c0_i32, %arg0 : i32, i32
  }
  func.func @transform_3(%arg0: i32) -> (i32, i32) {
    %c0_i32 = arith.constant 0 : i32
    %c0_i32_0 = arith.constant 0 : i32
    return %c0_i32, %arg0 : i32, i32
  }
}

module attributes {stable_mosaic.version = 11 : i64} {
  func.func @_prep_kernel(%arg0: i32, %arg1: memref<2x8x8x128xf32, #tpu.memory_space<vmem>>, %arg2: memref<128x128xbf16, #tpu.memory_space<vmem>>, %arg3: memref<1x128xf32, #tpu.memory_space<vmem>>, %arg4: memref<128x1152xbf16, #tpu.memory_space<vmem>>, %arg5: memref<2x128xf32, #tpu.memory_space<vmem>>) attributes {dimension_semantics = [#tpu.dimension_semantics<arbitrary>], iteration_bounds = array<i64: 1>, scalar_prefetch = 0 : i64, scratch_operands = 0 : i64, tpu.core_type = #tpu.core_type<tc>, window_params = [{pipeline_mode = #tpu.pipeline_mode<synchronous>, transform_indices = @transform_0, window_bounds = array<i64: 2, 8, 8, 128>}, {pipeline_mode = #tpu.pipeline_mode<synchronous>, transform_indices = @transform_1, window_bounds = array<i64: 128, 128>}, {pipeline_mode = #tpu.pipeline_mode<synchronous>, transform_indices = @transform_2, window_bounds = array<i64: 1, 128>}, {pipeline_mode = #tpu.pipeline_mode<synchronous>, transform_indices = @transform_3, window_bounds = array<i64: 128, 1152>}, {pipeline_mode = #tpu.pipeline_mode<synchronous>, transform_indices = @transform_4, window_bounds = array<i64: 2, 128>}]} {
    %c0 = arith.constant 0 : index
    %c0_0 = arith.constant 0 : index
    %c0_1 = arith.constant 0 : index
    %c0_2 = arith.constant 0 : index
    %0 = vector.load %arg1[%c0, %c0_0, %c0_1, %c0_2] : memref<2x8x8x128xf32, #tpu.memory_space<vmem>>, vector<2x8x8x128xf32>
    %1 = vector.extract_strided_slice %0 {offsets = [0, 1, 0, 0], sizes = [2, 1, 8, 128], strides = [1, 1, 1, 1]} : vector<2x8x8x128xf32> to vector<2x1x8x128xf32>
    %2 = vector.extract_strided_slice %0 {offsets = [0, 6, 0, 0], sizes = [2, 1, 8, 128], strides = [1, 1, 1, 1]} : vector<2x8x8x128xf32> to vector<2x1x8x128xf32>
    %3 = tpu.concatenate %1, %0, %2 in 1 : vector<2x1x8x128xf32>, vector<2x8x8x128xf32>, vector<2x1x8x128xf32> -> vector<2x10x8x128xf32>
    %4 = vector.extract_strided_slice %3 {offsets = [0, 0, 1, 0], sizes = [2, 10, 1, 128], strides = [1, 1, 1, 1]} : vector<2x10x8x128xf32> to vector<2x10x1x128xf32>
    %5 = vector.extract_strided_slice %3 {offsets = [0, 0, 6, 0], sizes = [2, 10, 1, 128], strides = [1, 1, 1, 1]} : vector<2x10x8x128xf32> to vector<2x10x1x128xf32>
    %6 = tpu.concatenate %4, %3, %5 in 2 : vector<2x10x1x128xf32>, vector<2x10x8x128xf32>, vector<2x10x1x128xf32> -> vector<2x10x10x128xf32>
    %7 = vector.extract_strided_slice %6 {offsets = [0, 0, 0, 0], sizes = [2, 8, 8, 128], strides = [1, 1, 1, 1]} : vector<2x10x10x128xf32> to vector<2x8x8x128xf32>
    %8 = vector.shape_cast %7 : vector<2x8x8x128xf32> to vector<128x128xf32>
    %9 = vector.extract_strided_slice %6 {offsets = [0, 0, 1, 0], sizes = [2, 8, 8, 128], strides = [1, 1, 1, 1]} : vector<2x10x10x128xf32> to vector<2x8x8x128xf32>
    %10 = vector.shape_cast %9 : vector<2x8x8x128xf32> to vector<128x128xf32>
    %11 = vector.extract_strided_slice %6 {offsets = [0, 0, 2, 0], sizes = [2, 8, 8, 128], strides = [1, 1, 1, 1]} : vector<2x10x10x128xf32> to vector<2x8x8x128xf32>
    %12 = vector.shape_cast %11 : vector<2x8x8x128xf32> to vector<128x128xf32>
    %13 = vector.extract_strided_slice %6 {offsets = [0, 1, 0, 0], sizes = [2, 8, 8, 128], strides = [1, 1, 1, 1]} : vector<2x10x10x128xf32> to vector<2x8x8x128xf32>
    %14 = vector.shape_cast %13 : vector<2x8x8x128xf32> to vector<128x128xf32>
    %15 = vector.extract_strided_slice %6 {offsets = [0, 1, 1, 0], sizes = [2, 8, 8, 128], strides = [1, 1, 1, 1]} : vector<2x10x10x128xf32> to vector<2x8x8x128xf32>
    %16 = vector.shape_cast %15 : vector<2x8x8x128xf32> to vector<128x128xf32>
    %17 = vector.extract_strided_slice %6 {offsets = [0, 1, 2, 0], sizes = [2, 8, 8, 128], strides = [1, 1, 1, 1]} : vector<2x10x10x128xf32> to vector<2x8x8x128xf32>
    %18 = vector.shape_cast %17 : vector<2x8x8x128xf32> to vector<128x128xf32>
    %19 = vector.extract_strided_slice %6 {offsets = [0, 2, 0, 0], sizes = [2, 8, 8, 128], strides = [1, 1, 1, 1]} : vector<2x10x10x128xf32> to vector<2x8x8x128xf32>
    %20 = vector.shape_cast %19 : vector<2x8x8x128xf32> to vector<128x128xf32>
    %21 = vector.extract_strided_slice %6 {offsets = [0, 2, 1, 0], sizes = [2, 8, 8, 128], strides = [1, 1, 1, 1]} : vector<2x10x10x128xf32> to vector<2x8x8x128xf32>
    %22 = vector.shape_cast %21 : vector<2x8x8x128xf32> to vector<128x128xf32>
    %23 = vector.extract_strided_slice %6 {offsets = [0, 2, 2, 0], sizes = [2, 8, 8, 128], strides = [1, 1, 1, 1]} : vector<2x10x10x128xf32> to vector<2x8x8x128xf32>
    %24 = vector.shape_cast %23 : vector<2x8x8x128xf32> to vector<128x128xf32>
    %25 = tpu.concatenate %8, %10, %12, %14, %16, %18, %20, %22, %24 in 1 : vector<128x128xf32>, vector<128x128xf32>, vector<128x128xf32>, vector<128x128xf32>, vector<128x128xf32>, vector<128x128xf32>, vector<128x128xf32>, vector<128x128xf32>, vector<128x128xf32> -> vector<128x1152xf32>
    %26 = arith.truncf %25 : vector<128x1152xf32> to vector<128x1152xbf16>
    %c0_3 = arith.constant 0 : index
    %c0_4 = arith.constant 0 : index
    %27 = vector.load %arg4[%c0_3, %c0_4] : memref<128x1152xbf16, #tpu.memory_space<vmem>>, vector<128x1152xbf16>
    tpu.vector_store %arg4[%c0_3, %c0_4], %26 {strides = array<i32>} : memref<128x1152xbf16, #tpu.memory_space<vmem>>, vector<128x1152xbf16>,
    %28 = vector.shape_cast %0 : vector<2x8x8x128xf32> to vector<2x64x128xf32>
    %cst = arith.constant dense<0.000000e+00> : vector<2x128xf32>
    %29 = vector.multi_reduction <add>, %28, %cst [1] : vector<2x64x128xf32> to vector<2x128xf32>
    %cst_5 = arith.constant 1.562500e-02 : f32
    %30 = vector.broadcast %cst_5 : f32 to vector<2x128xf32>
    %31 = arith.mulf %29, %30 : vector<2x128xf32>
    %32 = arith.truncf %31 : vector<2x128xf32> to vector<2x128xbf16>
    %c0_6 = arith.constant 0 : index
    %c0_7 = arith.constant 0 : index
    %33 = vector.load %arg2[%c0_6, %c0_7] : memref<128x128xbf16, #tpu.memory_space<vmem>>, vector<128x128xbf16>
    %cst_8 = arith.constant dense<0.000000e+00> : vector<2x128xf32>
    %34 = tpu.matmul %32, %33, %cst_8 {dimension_numbers = #tpu.dot_dimension_numbers<[1], [0], [0], [1], [0, 0, 1, 1], [], []>} : vector<2x128xbf16>, vector<128x128xbf16>, vector<2x128xf32> -> vector<2x128xf32>
    %c0_9 = arith.constant 0 : index
    %c0_10 = arith.constant 0 : index
    %35 = vector.load %arg3[%c0_9, %c0_10] : memref<1x128xf32, #tpu.memory_space<vmem>>, vector<1x128xf32>
    %36 = vector.broadcast %35 : vector<1x128xf32> to vector<2x128xf32>
    %37 = arith.addf %34, %36 : vector<2x128xf32>
    %c0_11 = arith.constant 0 : index
    %c0_12 = arith.constant 0 : index
    %38 = vector.load %arg5[%c0_11, %c0_12] : memref<2x128xf32, #tpu.memory_space<vmem>>, vector<2x128xf32>
    tpu.vector_store %arg5[%c0_11, %c0_12], %37 {strides = array<i32>} : memref<2x128xf32, #tpu.memory_space<vmem>>, vector<2x128xf32>,
    return
  }
  func.func @transform_0(%arg0: i32) -> (i32, i32, i32, i32) {
    %c0_i32 = arith.constant 0 : i32
    %c0_i32_0 = arith.constant 0 : i32
    %c0_i32_1 = arith.constant 0 : i32
    %c0_i32_2 = arith.constant 0 : i32
    %c0_i32_3 = arith.constant 0 : i32
    return %c0_i32, %c0_i32_0, %c0_i32_1, %c0_i32_2 : i32, i32, i32, i32
  }
  func.func @transform_1(%arg0: i32) -> (i32, i32) {
    %c0_i32 = arith.constant 0 : i32
    %c0_i32_0 = arith.constant 0 : i32
    %c0_i32_1 = arith.constant 0 : i32
    return %c0_i32, %c0_i32_0 : i32, i32
  }
  func.func @transform_2(%arg0: i32) -> (i32, i32) {
    %c0_i32 = arith.constant 0 : i32
    %c0_i32_0 = arith.constant 0 : i32
    %c0_i32_1 = arith.constant 0 : i32
    return %c0_i32, %c0_i32_0 : i32, i32
  }
  func.func @transform_3(%arg0: i32) -> (i32, i32) {
    %c0_i32 = arith.constant 0 : i32
    %c0_i32_0 = arith.constant 0 : i32
    %c0_i32_1 = arith.constant 0 : i32
    return %c0_i32, %c0_i32_0 : i32, i32
  }
  func.func @transform_4(%arg0: i32) -> (i32, i32) {
    %c0_i32 = arith.constant 0 : i32
    %c0_i32_0 = arith.constant 0 : i32
    %c0_i32_1 = arith.constant 0 : i32
    return %c0_i32, %c0_i32_0 : i32, i32
  }
}

</mosaic_0001>

<llo_original>
// kernel: kernel_predictor_forward.2
$region0: #{kernel_predictor_forward.2}
  #allocation0 [shape = 'u32[]', space=smem, size = 0x4, offset = 0x4, fixed_abs, tag = 'smem constant byte address 0x4 - core index']
  #allocation1 [shape = 'u32[144,128]{1,0:T(1,128)}', space=vmem, size = 0x12000, scoped, tag = 'internal scratch']
  %s0 = inlined_call_operand.hbm [shape: f32[2,8,8,128], index: 0, kind: input, shape index: {}]
  %s1 = inlined_call_operand.hbm [shape: bf16[128,128], index: 1, kind: input, shape index: {}]
  %s2 = inlined_call_operand.vmem [shape: f32[1,128], index: 2, kind: input, shape index: {}]
  %s3 = inlined_call_operand.vmem [shape: bf16[128,1152], index: 3, kind: output, shape index: {0}]
  %s4 = inlined_call_operand.vmem [shape: f32[2,128], index: 4, kind: output, shape index: {1}]
  %5 = xla_tuple %s3, %s4
  %s6 = sld [smem:[#allocation0]]
  $region38: #{kernel_predictor_forward.2} parent=0
    _
  %s8 = ssub.s32 1, %s6
  %s9 = scalar_select 0, %s8, %s6
  $region1: #{kernel_predictor_forward.2} parent=0
    #allocation2 [shape = 'u8[65536]{0}', space=vmem, size = 0x10000, scoped, tag = 'input window, operand 0, single buffered']
    #allocation3 [shape = 's32[1]{0}', space=sflag, size = 0x4, scoped, tag = 'scoped memory for kernel_predictor_forward.2']
    #allocation4 [shape = 'u8[32768]{0}', space=vmem, size = 0x8000, scoped, tag = 'input window, operand 1, single buffered']
    #allocation5 [shape = 's32[1]{0}', space=sflag, size = 0x4, scoped, tag = 'scoped memory for kernel_predictor_forward.2']
    %10 = vsyncpa [#allocation3], 0
    %11 = vsyncpa [#allocation5], 0
    // Predicated region
    $region2: #{kernel_predictor_forward.2} parent=1 // pred_check
      _
    $region3: #{kernel_predictor_forward.2} parent=1 // pred_check_branch
      %13 = sbr.rel (0) target = $region5
    $region4: #{kernel_predictor_forward.2} parent=1 // pred_region
      %s15 = ssub.s32 2048, 2048
      %16 = vsyncadd [#allocation3], %s15
      %s17 = sshll.u32 [#allocation2], 4
      %s18 = int_to_ptr.vmem [resolvable:$true] %s17
      %23 = dma.hbm_to_vmem [thread:$0]  %s0, 2048, %s18, [#allocation3], 128, 128, 8
    $region5: #{kernel_predictor_forward.2} parent=1 // pred_fallthru
      _
    // Predicated region
    $region6: #{kernel_predictor_forward.2} parent=1 // pred_check
      _
    $region7: #{kernel_predictor_forward.2} parent=1 // pred_check_branch
      %25 = sbr.rel (0) target = $region9
    $region8: #{kernel_predictor_forward.2} parent=1 // pred_region
      %s27 = ssub.s32 1024, 1024
      %28 = vsyncadd [#allocation5], %s27
      %s29 = sshll.u32 [#allocation4], 4
      %s30 = int_to_ptr.vmem [resolvable:$true] %s29
      %35 = dma.hbm_to_vmem [thread:$0]  %s1, 1024, %s30, [#allocation5], 64, 64, 4
    $region9: #{kernel_predictor_forward.2} parent=1 // pred_fallthru
      _
    // Predicated region
    $region10: #{kernel_predictor_forward.2} parent=1 // pred_check
      _
    $region11: #{kernel_predictor_forward.2} parent=1 // pred_check_branch
      %37 = sbr.rel (0) target = $region13
    $region12: #{kernel_predictor_forward.2} parent=1 // pred_region
      _
    $region13: #{kernel_predictor_forward.2} parent=1 // pred_fallthru
      _
    // Predicated region
    $region14: #{kernel_predictor_forward.2} parent=1 // pred_check
      _
    $region15: #{kernel_predictor_forward.2} parent=1 // pred_check_branch
      %39 = sbr.rel (0) target = $region17
    $region16: #{kernel_predictor_forward.2} parent=1 // pred_region
      %40 = dma.done [#allocation3], 2048
    $region17: #{kernel_predictor_forward.2} parent=1 // pred_fallthru
      _
    // Predicated region
    $region18: #{kernel_predictor_forward.2} parent=1 // pred_check
      _
    $region19: #{kernel_predictor_forward.2} parent=1 // pred_check_branch
      %42 = sbr.rel (0) target = $region21
    $region20: #{kernel_predictor_forward.2} parent=1 // pred_region
      %43 = dma.done [#allocation5], 1024
    $region21: #{kernel_predictor_forward.2} parent=1 // pred_fallthru
      _
    %v45 = vld [vmem:[#allocation2] sm:$0xff]
    %v46 = vld [vmem:[#allocation2 + $0x8] sm:$0xff]
    %v47 = vld [vmem:[#allocation2 + $0x10] sm:$0xff]
    %v48 = vld [vmem:[#allocation2 + $0x18] sm:$0xff]
    %v49 = vld [vmem:[#allocation2 + $0x20] sm:$0xff]
    %v50 = vld [vmem:[#allocation2 + $0x28] sm:$0xff]
    %v51 = vld [vmem:[#allocation2 + $0x30] sm:$0xff]
    %v52 = vld [vmem:[#allocation2 + $0x38] sm:$0xff]
    %v53 = vld [vmem:[#allocation2 + $0x40] sm:$0xff]
    %v54 = vld [vmem:[#allocation2 + $0x48] sm:$0xff]
    %v55 = vld [vmem:[#allocation2 + $0x50] sm:$0xff]
    %v56 = vld [vmem:[#allocation2 + $0x58] sm:$0xff]
    %v57 = vld [vmem:[#allocation2 + $0x60] sm:$0xff]
    %v58 = vld [vmem:[#allocation2 + $0x68] sm:$0xff]
    %v59 = vld [vmem:[#allocation2 + $0x70] sm:$0xff]
    %v60 = vld [vmem:[#allocation2 + $0x78] sm:$0xff]
    %v77 = vrot.slane %v46, 1
    %v78 = vrot.slane %v45, 1
    %v79 = vrot.slane %v47, 1
    %v80 = vrot.slane %v48, 1
    %v81 = vrot.slane %v49, 1
    %v82 = vrot.slane %v50, 1
    %v83 = vrot.slane %v51, 1
    %v84 = vrot.slane %v52, 1
    %v85 = vrot.slane %v54, 1
    %v86 = vrot.slane %v53, 1
    %v87 = vrot.slane %v55, 1
    %v88 = vrot.slane %v56, 1
    %v89 = vrot.slane %v57, 1
    %v90 = vrot.slane %v58, 1
    %v91 = vrot.slane %v59, 1
    %v92 = vrot.slane %v60, 1
    %v109 = vrot.slane %v46, 7
    %v110 = vrot.slane %v45, 7
    %v111 = vrot.slane %v47, 7
    %v112 = vrot.slane %v48, 7
    %v113 = vrot.slane %v49, 7
    %v114 = vrot.slane %v50, 7
    %v115 = vrot.slane %v51, 7
    %v116 = vrot.slane %v52, 7
    %v117 = vrot.slane %v54, 7
    %v118 = vrot.slane %v53, 7
    %v119 = vrot.slane %v55, 7
    %v120 = vrot.slane %v56, 7
    %v121 = vrot.slane %v57, 7
    %v122 = vrot.slane %v58, 7
    %v123 = vrot.slane %v59, 7
    %v124 = vrot.slane %v60, 7
    %v141 = vrot.slane %v46, 5
    %v142 = vrot.slane %v45, 5
    %v143 = vrot.slane %v47, 5
    %v144 = vrot.slane %v48, 5
    %v145 = vrot.slane %v49, 5
    %v146 = vrot.slane %v50, 5
    %v147 = vrot.slane %v51, 5
    %v148 = vrot.slane %v52, 5
    %v149 = vrot.slane %v54, 5
    %v150 = vrot.slane %v53, 5
    %v151 = vrot.slane %v55, 5
    %v152 = vrot.slane %v56, 5
    %v153 = vrot.slane %v57, 5
    %v154 = vrot.slane %v58, 5
    %v155 = vrot.slane %v59, 5
    %v156 = vrot.slane %v60, 5
    %vm173 = vcmask 1040384
    %v174 = vsel %vm173, %v77, %v109
    %v175 = vsel %vm173, %v78, %v110
    %v176 = vsel %vm173, %v79, %v111
    %v177 = vsel %vm173, %v80, %v112
    %v178 = vsel %vm173, %v81, %v113
    %v179 = vsel %vm173, %v82, %v114
    %v180 = vsel %vm173, %v83, %v115
    %v181 = vsel %vm173, %v84, %v116
    %v182 = vsel %vm173, %v85, %v117
    %v183 = vsel %vm173, %v86, %v118
    %v184 = vsel %vm173, %v87, %v119
    %v185 = vsel %vm173, %v88, %v120
    %v186 = vsel %vm173, %v89, %v121
    %v187 = vsel %vm173, %v90, %v122
    %v188 = vsel %vm173, %v91, %v123
    %v189 = vsel %vm173, %v92, %v124
    %v190 = vsel %vm173, %v109, %v141
    %v191 = vsel %vm173, %v110, %v142
    %v192 = vsel %vm173, %v111, %v143
    %v193 = vsel %vm173, %v112, %v144
    %v194 = vsel %vm173, %v113, %v145
    %v195 = vsel %vm173, %v114, %v146
    %v196 = vsel %vm173, %v115, %v147
    %v197 = vsel %vm173, %v116, %v148
    %v198 = vsel %vm173, %v117, %v149
    %v199 = vsel %vm173, %v118, %v150
    %v200 = vsel %vm173, %v119, %v151
    %v201 = vsel %vm173, %v120, %v152
    %v202 = vsel %vm173, %v121, %v153
    %v203 = vsel %vm173, %v122, %v154
    %v204 = vsel %vm173, %v123, %v155
    %v205 = vsel %vm173, %v124, %v156
    %vm234 = vcmask 1046528
    %v235 = vrot.slane %v174, 1
    %v236 = vrot.slane %v190, 1
    %v237 = vsel %vm234, %v235, %v236
    %v238 = vrot.slane %v175, 1
    %v239 = vrot.slane %v191, 1
    %v240 = vsel %vm234, %v238, %v239
    %v241 = vrot.slane %v176, 1
    %v242 = vrot.slane %v192, 1
    %v243 = vsel %vm234, %v241, %v242
    %v244 = vrot.slane %v177, 1
    %v245 = vrot.slane %v193, 1
    %v246 = vsel %vm234, %v244, %v245
    %v247 = vrot.slane %v178, 1
    %v248 = vrot.slane %v194, 1
    %v249 = vsel %vm234, %v247, %v248
    %v250 = vrot.slane %v179, 1
    %v251 = vrot.slane %v195, 1
    %v252 = vsel %vm234, %v250, %v251
    %v253 = vrot.slane %v180, 1
    %v254 = vrot.slane %v196, 1
    %v255 = vsel %vm234, %v253, %v254
    %v256 = vrot.slane %v182, 1
    %v257 = vrot.slane %v198, 1
    %v258 = vsel %vm234, %v256, %v257
    %v259 = vrot.slane %v183, 1
    %v260 = vrot.slane %v199, 1
    %v261 = vsel %vm234, %v259, %v260
    %v262 = vrot.slane %v184, 1
    %v263 = vrot.slane %v200, 1
    %v264 = vsel %vm234, %v262, %v263
    %v265 = vrot.slane %v185, 1
    %v266 = vrot.slane %v201, 1
    %v267 = vsel %vm234, %v265, %v266
    %v268 = vrot.slane %v186, 1
    %v269 = vrot.slane %v202, 1
    %v270 = vsel %vm234, %v268, %v269
    %v271 = vrot.slane %v187, 1
    %v272 = vrot.slane %v203, 1
    %v273 = vsel %vm234, %v271, %v272
    %v274 = vrot.slane %v188, 1
    %v275 = vrot.slane %v204, 1
    %v276 = vsel %vm234, %v274, %v275
    %vm291 = vcmask 1045504
    %v292 = vrot.slane %v174, 2
    %v293 = vrot.slane %v190, 2
    %v294 = vsel %vm291, %v292, %v293
    %v295 = vrot.slane %v175, 2
    %v296 = vrot.slane %v191, 2
    %v297 = vsel %vm291, %v295, %v296
    %v298 = vrot.slane %v176, 2
    %v299 = vrot.slane %v192, 2
    %v300 = vsel %vm291, %v298, %v299
    %v301 = vrot.slane %v177, 2
    %v302 = vrot.slane %v193, 2
    %v303 = vsel %vm291, %v301, %v302
    %v304 = vrot.slane %v178, 2
    %v305 = vrot.slane %v194, 2
    %v306 = vsel %vm291, %v304, %v305
    %v307 = vrot.slane %v179, 2
    %v308 = vrot.slane %v195, 2
    %v309 = vsel %vm291, %v307, %v308
    %v310 = vrot.slane %v180, 2
    %v311 = vrot.slane %v196, 2
    %v312 = vsel %vm291, %v310, %v311
    %v313 = vrot.slane %v182, 2
    %v314 = vrot.slane %v198, 2
    %v315 = vsel %vm291, %v313, %v314
    %v316 = vrot.slane %v183, 2
    %v317 = vrot.slane %v199, 2
    %v318 = vsel %vm291, %v316, %v317
    %v319 = vrot.slane %v184, 2
    %v320 = vrot.slane %v200, 2
    %v321 = vsel %vm291, %v319, %v320
    %v322 = vrot.slane %v185, 2
    %v323 = vrot.slane %v201, 2
    %v324 = vsel %vm291, %v322, %v323
    %v325 = vrot.slane %v186, 2
    %v326 = vrot.slane %v202, 2
    %v327 = vsel %vm291, %v325, %v326
    %v328 = vrot.slane %v187, 2
    %v329 = vrot.slane %v203, 2
    %v330 = vsel %vm291, %v328, %v329
    %v331 = vrot.slane %v188, 2
    %v332 = vrot.slane %v204, 2
    %v333 = vsel %vm291, %v331, %v332
    %v352 = vrot.slane %v181, 1
    %v353 = vrot.slane %v197, 1
    %v354 = vsel %vm234, %v352, %v353
    %v355 = vrot.slane %v189, 1
    %v356 = vrot.slane %v205, 1
    %v357 = vsel %vm234, %v355, %v356
    %v360 = vrot.slane %v181, 2
    %v361 = vrot.slane %v197, 2
    %v362 = vsel %vm291, %v360, %v361
    %v363 = vrot.slane %v189, 2
    %v364 = vrot.slane %v205, 2
    %v365 = vsel %vm291, %v363, %v364
    %v368 = vpack.c.bf16 %v175, %v174
    %v369 = vpack.c.bf16 %v240, %v237
    %v370 = vpack.c.bf16 %v297, %v294
    %v371 = vpack.c.bf16 %v174, %v175
    %v372 = vpack.c.bf16 %v237, %v240
    %v373 = vpack.c.bf16 %v294, %v297
    %v374 = vpack.c.bf16 %v176, %v174
    %v375 = vpack.c.bf16 %v243, %v237
    %v376 = vpack.c.bf16 %v300, %v294
    %v377 = vpack.c.bf16 %v177, %v176
    %v378 = vpack.c.bf16 %v246, %v243
    %v379 = vpack.c.bf16 %v303, %v300
    %v380 = vpack.c.bf16 %v178, %v177
    %v381 = vpack.c.bf16 %v249, %v246
    %v382 = vpack.c.bf16 %v306, %v303
    %v383 = vpack.c.bf16 %v179, %v178
    %v384 = vpack.c.bf16 %v252, %v249
    %v385 = vpack.c.bf16 %v309, %v306
    %v386 = vpack.c.bf16 %v180, %v179
    %v387 = vpack.c.bf16 %v255, %v252
    %v388 = vpack.c.bf16 %v312, %v309
    %v389 = vpack.c.bf16 %v181, %v180
    %v390 = vpack.c.bf16 %v354, %v255
    %v391 = vpack.c.bf16 %v362, %v312
    %v392 = vpack.c.bf16 %v180, %v181
    %v393 = vpack.c.bf16 %v255, %v354
    %v394 = vpack.c.bf16 %v312, %v362
    %v395 = vpack.c.bf16 %v183, %v182
    %v396 = vpack.c.bf16 %v261, %v258
    %v397 = vpack.c.bf16 %v318, %v315
    %v398 = vpack.c.bf16 %v182, %v183
    %v399 = vpack.c.bf16 %v258, %v261
    %v400 = vpack.c.bf16 %v315, %v318
    %v401 = vpack.c.bf16 %v184, %v182
    %v402 = vpack.c.bf16 %v264, %v258
    %v403 = vpack.c.bf16 %v321, %v315
    %v404 = vpack.c.bf16 %v185, %v184
    %v405 = vpack.c.bf16 %v267, %v264
    %v406 = vpack.c.bf16 %v324, %v321
    %v407 = vpack.c.bf16 %v186, %v185
    %v408 = vpack.c.bf16 %v270, %v267
    %v409 = vpack.c.bf16 %v327, %v324
    %v410 = vpack.c.bf16 %v187, %v186
    %v411 = vpack.c.bf16 %v273, %v270
    %v412 = vpack.c.bf16 %v330, %v327
    %v413 = vpack.c.bf16 %v188, %v187
    %v414 = vpack.c.bf16 %v276, %v273
    %v415 = vpack.c.bf16 %v333, %v330
    %v416 = vpack.c.bf16 %v189, %v188
    %v417 = vpack.c.bf16 %v357, %v276
    %v418 = vpack.c.bf16 %v365, %v333
    %v419 = vpack.c.bf16 %v188, %v189
    %v420 = vpack.c.bf16 %v276, %v357
    %v421 = vpack.c.bf16 %v333, %v365
    %v476 = vunpack.c.l.b16 %v368
    %v477 = vunpack.c.l.b16 %v369
    %v478 = vunpack.c.l.b16 %v370
    %v479 = vunpack.c.l.b16 %v371
    %v480 = vunpack.c.l.b16 %v372
    %v481 = vunpack.c.l.b16 %v373
    %v482 = vunpack.c.l.b16 %v374
    %v483 = vunpack.c.l.b16 %v375
    %v484 = vunpack.c.l.b16 %v376
    %v485 = vunpack.c.h.b16 %v368
    %v486 = vunpack.c.h.b16 %v369
    %v487 = vunpack.c.h.b16 %v370
    %v488 = vunpack.c.h.b16 %v371
    %v489 = vunpack.c.h.b16 %v372
    %v490 = vunpack.c.h.b16 %v373
    %v491 = vunpack.c.h.b16 %v374
    %v492 = vunpack.c.h.b16 %v375
    %v493 = vunpack.c.h.b16 %v376
    %v494 = vunpack.c.l.b16 %v377
    %v495 = vunpack.c.l.b16 %v378
    %v496 = vunpack.c.l.b16 %v379
    %v497 = vunpack.c.l.b16 %v380
    %v498 = vunpack.c.l.b16 %v381
    %v499 = vunpack.c.l.b16 %v382
    %v500 = vunpack.c.h.b16 %v377
    %v501 = vunpack.c.h.b16 %v378
    %v502 = vunpack.c.h.b16 %v379
    %v503 = vunpack.c.h.b16 %v380
    %v504 = vunpack.c.h.b16 %v381
    %v505 = vunpack.c.h.b16 %v382
    %v506 = vunpack.c.l.b16 %v383
    %v507 = vunpack.c.l.b16 %v384
    %v508 = vunpack.c.l.b16 %v385
    %v509 = vunpack.c.l.b16 %v386
    %v510 = vunpack.c.l.b16 %v387
    %v511 = vunpack.c.l.b16 %v388
    %v512 = vunpack.c.h.b16 %v383
    %v513 = vunpack.c.h.b16 %v384
    %v514 = vunpack.c.h.b16 %v385
    %v515 = vunpack.c.h.b16 %v386
    %v516 = vunpack.c.h.b16 %v387
    %v517 = vunpack.c.h.b16 %v388
    %v518 = vunpack.c.l.b16 %v389
    %v519 = vunpack.c.l.b16 %v390
    %v520 = vunpack.c.l.b16 %v391
    %v521 = vunpack.c.l.b16 %v392
    %v522 = vunpack.c.l.b16 %v393
    %v523 = vunpack.c.l.b16 %v394
    %v524 = vunpack.c.h.b16 %v389
    %v525 = vunpack.c.h.b16 %v390
    %v526 = vunpack.c.h.b16 %v391
    %v527 = vunpack.c.h.b16 %v392
    %v528 = vunpack.c.h.b16 %v393
    %v529 = vunpack.c.h.b16 %v394
    %v530 = vunpack.c.l.b16 %v395
    %v531 = vunpack.c.l.b16 %v396
    %v532 = vunpack.c.l.b16 %v397
    %v533 = vunpack.c.l.b16 %v398
    %v534 = vunpack.c.l.b16 %v399
    %v535 = vunpack.c.l.b16 %v400
    %v536 = vunpack.c.l.b16 %v401
    %v537 = vunpack.c.l.b16 %v402
    %v538 = vunpack.c.l.b16 %v403
    %v539 = vunpack.c.h.b16 %v395
    %v540 = vunpack.c.h.b16 %v396
    %v541 = vunpack.c.h.b16 %v397
    %v542 = vunpack.c.h.b16 %v398
    %v543 = vunpack.c.h.b16 %v399
    %v544 = vunpack.c.h.b16 %v400
    %v545 = vunpack.c.h.b16 %v401
    %v546 = vunpack.c.h.b16 %v402
    %v547 = vunpack.c.h.b16 %v403
    %v548 = vunpack.c.l.b16 %v404
    %v549 = vunpack.c.l.b16 %v405
    %v550 = vunpack.c.l.b16 %v406
    %v551 = vunpack.c.l.b16 %v407
    %v552 = vunpack.c.l.b16 %v408
    %v553 = vunpack.c.l.b16 %v409
    %v554 = vunpack.c.h.b16 %v404
    %v555 = vunpack.c.h.b16 %v405
    %v556 = vunpack.c.h.b16 %v406
    %v557 = vunpack.c.h.b16 %v407
    %v558 = vunpack.c.h.b16 %v408
    %v559 = vunpack.c.h.b16 %v409
    %v560 = vunpack.c.l.b16 %v410
    %v561 = vunpack.c.l.b16 %v411
    %v562 = vunpack.c.l.b16 %v412
    %v563 = vunpack.c.l.b16 %v413
    %v564 = vunpack.c.l.b16 %v414
    %v565 = vunpack.c.l.b16 %v415
    %v566 = vunpack.c.h.b16 %v410
    %v567 = vunpack.c.h.b16 %v411
    %v568 = vunpack.c.h.b16 %v412
    %v569 = vunpack.c.h.b16 %v413
    %v570 = vunpack.c.h.b16 %v414
    %v571 = vunpack.c.h.b16 %v415
    %v572 = vunpack.c.l.b16 %v416
    %v573 = vunpack.c.l.b16 %v417
    %v574 = vunpack.c.l.b16 %v418
    %v575 = vunpack.c.l.b16 %v419
    %v576 = vunpack.c.l.b16 %v420
    %v577 = vunpack.c.l.b16 %v421
    %v578 = vunpack.c.h.b16 %v416
    %v579 = vunpack.c.h.b16 %v417
    %v580 = vunpack.c.h.b16 %v418
    %v581 = vunpack.c.h.b16 %v419
    %v582 = vunpack.c.h.b16 %v420
    %v583 = vunpack.c.h.b16 %v421
    %v584 = vpack.c.b16 %v477, %v476
    %v585 = vpack.c.b16 %v479, %v478
    %v586 = vpack.c.b16 %v481, %v480
    %v587 = vpack.c.b16 %v483, %v482
    %v588 = vpack.c.b16 %v484, %v484
    %v589 = vpack.c.b16 %v486, %v485
    %v590 = vpack.c.b16 %v488, %v487
    %v591 = vpack.c.b16 %v490, %v489
    %v592 = vpack.c.b16 %v492, %v491
    %v593 = vpack.c.b16 %v493, %v493
    %v594 = vpack.c.b16 %v494, %v484
    %v595 = vpack.c.b16 %v496, %v495
    %v596 = vpack.c.b16 %v498, %v497
    %v597 = vpack.c.b16 %v499, %v499
    %v598 = vpack.c.b16 %v500, %v493
    %v599 = vpack.c.b16 %v502, %v501
    %v600 = vpack.c.b16 %v504, %v503
    %v601 = vpack.c.b16 %v505, %v505
    %v602 = vpack.c.b16 %v506, %v499
    %v603 = vpack.c.b16 %v508, %v507
    %v604 = vpack.c.b16 %v510, %v509
    %v605 = vpack.c.b16 %v511, %v511
    %v606 = vpack.c.b16 %v512, %v505
    %v607 = vpack.c.b16 %v514, %v513
    %v608 = vpack.c.b16 %v516, %v515
    %v609 = vpack.c.b16 %v517, %v517
    %v610 = vpack.c.b16 %v518, %v511
    %v611 = vpack.c.b16 %v520, %v519
    %v612 = vpack.c.b16 %v522, %v521
    %v613 = vpack.c.b16 %v523, %v523
    %v614 = vpack.c.b16 %v524, %v517
    %v615 = vpack.c.b16 %v526, %v525
    %v616 = vpack.c.b16 %v528, %v527
    %v617 = vpack.c.b16 %v529, %v529
    %v618 = vpack.c.b16 %v531, %v530
    %v619 = vpack.c.b16 %v533, %v532
    %v620 = vpack.c.b16 %v535, %v534
    %v621 = vpack.c.b16 %v537, %v536
    %v622 = vpack.c.b16 %v538, %v538
    %v623 = vpack.c.b16 %v540, %v539
    %v624 = vpack.c.b16 %v542, %v541
    %v625 = vpack.c.b16 %v544, %v543
    %v626 = vpack.c.b16 %v546, %v545
    %v627 = vpack.c.b16 %v547, %v547
    %v628 = vpack.c.b16 %v548, %v538
    %v629 = vpack.c.b16 %v550, %v549
    %v630 = vpack.c.b16 %v552, %v551
    %v631 = vpack.c.b16 %v553, %v553
    %v632 = vpack.c.b16 %v554, %v547
    %v633 = vpack.c.b16 %v556, %v555
    %v634 = vpack.c.b16 %v558, %v557
    %v635 = vpack.c.b16 %v559, %v559
    %v636 = vpack.c.b16 %v560, %v553
    %v637 = vpack.c.b16 %v562, %v561
    %v638 = vpack.c.b16 %v564, %v563
    %v639 = vpack.c.b16 %v565, %v565
    %v640 = vpack.c.b16 %v566, %v559
    %v641 = vpack.c.b16 %v568, %v567
    %v642 = vpack.c.b16 %v570, %v569
    %v643 = vpack.c.b16 %v571, %v571
    %v644 = vpack.c.b16 %v572, %v565
    %v645 = vpack.c.b16 %v574, %v573
    %v646 = vpack.c.b16 %v576, %v575
    %v647 = vpack.c.b16 %v577, %v577
    %v648 = vpack.c.b16 %v578, %v571
    %v649 = vpack.c.b16 %v580, %v579
    %v650 = vpack.c.b16 %v582, %v581
    %v651 = vpack.c.b16 %v583, %v583
    %720 = vst [vmem:[%s3] sm:$0xff] %v584
    %721 = vst [vmem:[%s3 + $0x8] sm:$0xff] %v585
    %722 = vst [vmem:[%s3 + $0x10] sm:$0xff] %v586
    %723 = vst [vmem:[%s3 + $0x18] sm:$0xff] %v587
    %724 = vst [vmem:[%s3 + $0x20] sm:$0xf] %v588
    %725 = vst [vmem:[%s3 + $0x24] sm:$0xff] %v589
    %726 = vst [vmem:[%s3 + $0x2c] sm:$0xff] %v590
    %727 = vst [vmem:[%s3 + $0x34] sm:$0xff] %v591
    %728 = vst [vmem:[%s3 + $0x3c] sm:$0xff] %v592
    %729 = vst [vmem:[%s3 + $0x44] sm:$0xf] %v593
    %730 = vst [vmem:[%s3 + $0x48] sm:$0xff] %v587
    %731 = vst [vmem:[%s3 + $0x50] sm:$0xff] %v594
    %732 = vst [vmem:[%s3 + $0x58] sm:$0xff] %v595
    %733 = vst [vmem:[%s3 + $0x60] sm:$0xff] %v596
    %734 = vst [vmem:[%s3 + $0x68] sm:$0xf] %v597
    %735 = vst [vmem:[%s3 + $0x6c] sm:$0xff] %v592
    %736 = vst [vmem:[%s3 + $0x74] sm:$0xff] %v598
    %737 = vst [vmem:[%s3 + $0x7c] sm:$0xff] %v599
    %738 = vst [vmem:[%s3 + $0x84] sm:$0xff] %v600
    %739 = vst [vmem:[%s3 + $0x8c] sm:$0xf] %v601
    %740 = vst [vmem:[%s3 + $0x90] sm:$0xff] %v596
    %741 = vst [vmem:[%s3 + $0x98] sm:$0xff] %v602
    %742 = vst [vmem:[%s3 + $0xa0] sm:$0xff] %v603
    %743 = vst [vmem:[%s3 + $0xa8] sm:$0xff] %v604
    %744 = vst [vmem:[%s3 + $0xb0] sm:$0xf] %v605
    %745 = vst [vmem:[%s3 + $0xb4] sm:$0xff] %v600
    %746 = vst [vmem:[%s3 + $0xbc] sm:$0xff] %v606
    %747 = vst [vmem:[%s3 + $0xc4] sm:$0xff] %v607
    %748 = vst [vmem:[%s3 + $0xcc] sm:$0xff] %v608
    %749 = vst [vmem:[%s3 + $0xd4] sm:$0xf] %v609
    %750 = vst [vmem:[%s3 + $0xd8] sm:$0xff] %v604
    %751 = vst [vmem:[%s3 + $0xe0] sm:$0xff] %v610
    %752 = vst [vmem:[%s3 + $0xe8] sm:$0xff] %v611
    %753 = vst [vmem:[%s3 + $0xf0] sm:$0xff] %v612
    %754 = vst [vmem:[%s3 + $0xf8] sm:$0xf] %v613
    %755 = vst [vmem:[%s3 + $0xfc] sm:$0xff] %v608
    %756 = vst [vmem:[%s3 + $0x104] sm:$0xff] %v614
    %757 = vst [vmem:[%s3 + $0x10c] sm:$0xff] %v615
    %758 = vst [vmem:[%s3 + $0x114] sm:$0xff] %v616
    %759 = vst [vmem:[%s3 + $0x11c] sm:$0xf] %v617
    %760 = vst [vmem:[%s3 + $0x120] sm:$0xff] %v618
    %761 = vst [vmem:[%s3 + $0x128] sm:$0xff] %v619
    %762 = vst [vmem:[%s3 + $0x130] sm:$0xff] %v620
    %763 = vst [vmem:[%s3 + $0x138] sm:$0xff] %v621
    %764 = vst [vmem:[%s3 + $0x140] sm:$0xf] %v622
    %765 = vst [vmem:[%s3 + $0x144] sm:$0xff] %v623
    %766 = vst [vmem:[%s3 + $0x14c] sm:$0xff] %v624
    %767 = vst [vmem:[%s3 + $0x154] sm:$0xff] %v625
    %768 = vst [vmem:[%s3 + $0x15c] sm:$0xff] %v626
    %769 = vst [vmem:[%s3 + $0x164] sm:$0xf] %v627
    %770 = vst [vmem:[%s3 + $0x168] sm:$0xff] %v621
    %771 = vst [vmem:[%s3 + $0x170] sm:$0xff] %v628
    %772 = vst [vmem:[%s3 + $0x178] sm:$0xff] %v629
    %773 = vst [vmem:[%s3 + $0x180] sm:$0xff] %v630
    %774 = vst [vmem:[%s3 + $0x188] sm:$0xf] %v631
    %775 = vst [vmem:[%s3 + $0x18c] sm:$0xff] %v626
    %776 = vst [vmem:[%s3 + $0x194] sm:$0xff] %v632
    %777 = vst [vmem:[%s3 + $0x19c] sm:$0xff] %v633
    %778 = vst [vmem:[%s3 + $0x1a4] sm:$0xff] %v634
    %779 = vst [vmem:[%s3 + $0x1ac] sm:$0xf] %v635
    %780 = vst [vmem:[%s3 + $0x1b0] sm:$0xff] %v630
    %781 = vst [vmem:[%s3 + $0x1b8] sm:$0xff] %v636
    %782 = vst [vmem:[%s3 + $0x1c0] sm:$0xff] %v637
    %783 = vst [vmem:[%s3 + $0x1c8] sm:$0xff] %v638
    %784 = vst [vmem:[%s3 + $0x1d0] sm:$0xf] %v639
    %785 = vst [vmem:[%s3 + $0x1d4] sm:$0xff] %v634
    %786 = vst [vmem:[%s3 + $0x1dc] sm:$0xff] %v640
    %787 = vst [vmem:[%s3 + $0x1e4] sm:$0xff] %v641
    %788 = vst [vmem:[%s3 + $0x1ec] sm:$0xff] %v642
    %789 = vst [vmem:[%s3 + $0x1f4] sm:$0xf] %v643
    %790 = vst [vmem:[%s3 + $0x1f8] sm:$0xff] %v638
    %791 = vst [vmem:[%s3 + $0x200] sm:$0xff] %v644
    %792 = vst [vmem:[%s3 + $0x208] sm:$0xff] %v645
    %793 = vst [vmem:[%s3 + $0x210] sm:$0xff] %v646
    %794 = vst [vmem:[%s3 + $0x218] sm:$0xf] %v647
    %795 = vst [vmem:[%s3 + $0x21c] sm:$0xff] %v642
    %796 = vst [vmem:[%s3 + $0x224] sm:$0xff] %v648
    %797 = vst [vmem:[%s3 + $0x22c] sm:$0xff] %v649
    %798 = vst [vmem:[%s3 + $0x234] sm:$0xff] %v650
    %799 = vst [vmem:[%s3 + $0x23c] sm:$0xf] %v651
    %v800 = vadd.f32 %v45, %v46
    %v801 = vadd.f32 %v800, %v47
    %v802 = vadd.f32 %v801, %v48
    %v803 = vadd.f32 %v802, %v49
    %v804 = vadd.f32 %v803, %v50
    %v805 = vadd.f32 %v804, %v51
    %v806 = vadd.f32 %v805, %v52
    %v807 = vrot.slane %v806, 4
    %v808 = vadd.f32 %v806, %v807
    %v809 = vrot.slane %v808, 2
    %v810 = vadd.f32 %v808, %v809
    %v811 = vrot.slane %v810, 1
    %v812 = vadd.f32 %v810, %v811
    %v813 = vadd.f32 %v53, %v54
    %v814 = vadd.f32 %v813, %v55
    %v815 = vadd.f32 %v814, %v56
    %v816 = vadd.f32 %v815, %v57
    %v817 = vadd.f32 %v816, %v58
    %v818 = vadd.f32 %v817, %v59
    %v819 = vadd.f32 %v818, %v60
    %v820 = vrot.slane %v819, 4
    %v821 = vadd.f32 %v819, %v820
    %v822 = vrot.slane %v821, 2
    %v823 = vadd.f32 %v821, %v822
    %v824 = vrot.slane %v823, 1
    %v825 = vadd.f32 %v823, %v824
    %v826 = vmul.f32 %v812, 0.015625
    %v827 = vmul.f32 %v825, 0.015625
    %v828 = vpack.c.bf16 %v826, %v826
    %v829 = vpack.c.bf16 %v827, %v827
    %v830 = vld [vmem:[#allocation4] sm:$0xf]
    %v831 = vld [vmem:[#allocation4 + $0x4] sm:$0xf]
    %v832 = vld [vmem:[#allocation4 + $0x8] sm:$0xf]
    %v833 = vld [vmem:[#allocation4 + $0xc] sm:$0xf]
    %v834 = vld [vmem:[#allocation4 + $0x10] sm:$0xf]
    %v835 = vld [vmem:[#allocation4 + $0x14] sm:$0xf]
    %v836 = vld [vmem:[#allocation4 + $0x18] sm:$0xf]
    %v837 = vld [vmem:[#allocation4 + $0x1c] sm:$0xf]
    %v838 = vld [vmem:[#allocation4 + $0x20] sm:$0xf]
    %v839 = vld [vmem:[#allocation4 + $0x24] sm:$0xf]
    %v840 = vld [vmem:[#allocation4 + $0x28] sm:$0xf]
    %v841 = vld [vmem:[#allocation4 + $0x2c] sm:$0xf]
    %v842 = vld [vmem:[#allocation4 + $0x30] sm:$0xf]
    %v843 = vld [vmem:[#allocation4 + $0x34] sm:$0xf]
    %v844 = vld [vmem:[#allocation4 + $0x38] sm:$0xf]
    %v845 = vld [vmem:[#allocation4 + $0x3c] sm:$0xf]
    %v846 = vld [vmem:[%s2] sm:$0x1]
    %v848 = vlaneseq
    %v849 = vshrl.u32 %v848, 7
    %v850 = vsub.s32 0, %v849
    %v851 = vrot.slane %v846, %v850
    %v855 = vunpack.c.l.b16 %v828
    %v856 = vunpack.c.l.b16 %v829
    %vm857 = vcmask 1041409
    %v858 = vsel %vm857, %v856, %v855
    %v859 = vpack.c.b16 %v858, %v858
    %v877 = vunpack.c.l.b16 %v830
    %v878 = vunpack.c.l.b16 %v831
    %v879 = vunpack.c.l.b16 %v832
    %v880 = vunpack.c.l.b16 %v833
    %v881 = vunpack.c.l.b16 %v834
    %v882 = vunpack.c.l.b16 %v835
    %v883 = vunpack.c.l.b16 %v836
    %v884 = vunpack.c.l.b16 %v837
    %v885 = vunpack.c.l.b16 %v838
    %v886 = vunpack.c.l.b16 %v839
    %v887 = vunpack.c.l.b16 %v840
    %v888 = vunpack.c.l.b16 %v841
    %v889 = vunpack.c.l.b16 %v842
    %v890 = vunpack.c.l.b16 %v843
    %v891 = vunpack.c.l.b16 %v844
    %v892 = vunpack.c.l.b16 %v845
    %v893 = vpack.c.b16 %v878, %v877
    %v894 = vpack.c.b16 %v880, %v879
    %v895 = vpack.c.b16 %v882, %v881
    %v896 = vpack.c.b16 %v884, %v883
    %v897 = vpack.c.b16 %v886, %v885
    %v898 = vpack.c.b16 %v888, %v887
    %v899 = vpack.c.b16 %v890, %v889
    %v900 = vpack.c.b16 %v892, %v891
    %909 = vmatprep.subr.bf16.mxu0 0
    %910 = vmatpush1.bf16.msra.mxu0 %v900
    %911 = vmatprep.subr.bf16.mxu0 0
    %912 = vmatpush1.bf16.msra.mxu0 %v899
    %913 = vmatprep.subr.bf16.mxu0 0
    %914 = vmatpush1.bf16.msra.mxu0 %v898
    %915 = vmatprep.subr.bf16.mxu0 0
    %916 = vmatpush1.bf16.msra.mxu0 %v897
    %917 = vmatprep.subr.bf16.mxu0 0
    %918 = vmatpush1.bf16.msra.mxu0 %v896
    %919 = vmatprep.subr.bf16.mxu0 0
    %920 = vmatpush1.bf16.msra.mxu0 %v895
    %921 = vmatprep.subr.bf16.mxu0 0
    %922 = vmatpush1.bf16.msra.mxu0 %v894
    %923 = vmatprep.subr.bf16.mxu0 0
    %924 = vmatpush1.bf16.msra.mxu0 %v893
    %925 = vmatprep.subr.bf16.mxu0 0
    %926 = vmatpush2.bf16.msra.mxu0 0
    %927 = vmatprep.subr.bf16.mxu0 0
    %928 = vmatpush2.bf16.msra.mxu0 0
    %929 = vmatprep.subr.bf16.mxu0 0
    %930 = vmatpush2.bf16.msra.mxu0 0
    %931 = vmatprep.subr.bf16.mxu0 0
    %932 = vmatpush2.bf16.msra.mxu0 0
    %933 = vmatprep.subr.bf16.mxu0 0
    %934 = vmatpush2.bf16.msra.mxu0 0
    %935 = vmatprep.subr.bf16.mxu0 0
    %936 = vmatpush2.bf16.msra.mxu0 0
    %937 = vmatprep.subr.bf16.mxu0 0
    %938 = vmatpush2.bf16.msra.mxu0 0
    %939 = vmatprep.subr.bf16.mxu0 0
    %940 = vmatpush2.bf16.msra.mxu0 0
    %941 = vmatprep.mubr.bf16.mxu0 0
    %942 = vmatmul.mubr.bf16.gmra.mxu0 %v859
    %v943 = vpop.f32.mrf.mxu0
    %v944 = vadd.f32 %v851, %v943
    %v945 = vpop.f32.mrf.mxu0
    %v946 = vpop.f32.mrf.mxu0
    %v947 = vpop.f32.mrf.mxu0
    %948 = vdwg.mxu0
    %949 = vst [vmem:[%s4] sm:$0x3] %v944
    // Predicated region
    $region22: #{kernel_predictor_forward.2} parent=1 // pred_check
      _
    $region23: #{kernel_predictor_forward.2} parent=1 // pred_check_branch
      %951 = sbr.rel (0) target = $region25
    $region24: #{kernel_predictor_forward.2} parent=1 // pred_region
      _
    $region25: #{kernel_predictor_forward.2} parent=1 // pred_fallthru
      _
    // Predicated region
    $region26: #{kernel_predictor_forward.2} parent=1 // pred_check
      _
    $region27: #{kernel_predictor_forward.2} parent=1 // pred_check_branch
      %953 = sbr.rel (0) target = $region29
    $region28: #{kernel_predictor_forward.2} parent=1 // pred_region
      _
    $region29: #{kernel_predictor_forward.2} parent=1 // pred_fallthru
      _
    // Predicated region
    $region30: #{kernel_predictor_forward.2} parent=1 // pred_check
      _
    $region31: #{kernel_predictor_forward.2} parent=1 // pred_check_branch
      %955 = sbr.rel (0) target = $region33
    $region32: #{kernel_predictor_forward.2} parent=1 // pred_region
      _
    $region33: #{kernel_predictor_forward.2} parent=1 // pred_fallthru
      _
    // Predicated region
    $region34: #{kernel_predictor_forward.2} parent=1 // pred_check
      _
    $region35: #{kernel_predictor_forward.2} parent=1 // pred_check_branch
      %957 = sbr.rel (0) target = $region37
    $region36: #{kernel_predictor_forward.2} parent=1 // pred_region
      _
    $region37: #{kernel_predictor_forward.2} parent=1 // pred_fallthru
      _
    %958 = vsyncpa [#allocation3], 1
    %959 = vsyncpa [#allocation5], 1

// kernel: kernel_predictor_forward.3
$region0: #{kernel_predictor_forward.3}
  #allocation0 [shape = 'u32[]', space=smem, size = 0x4, offset = 0x4, fixed_abs, tag = 'smem constant byte address 0x4 - core index']
  #allocation1 [shape = 'u32[144,128]{1,0:T(1,128)}', space=vmem, size = 0x12000, scoped, tag = 'internal scratch']
  %s0 = inlined_call_operand.vmem [shape: bf16[128,1152], index: 0, kind: input, shape index: {}]
  %s1 = inlined_call_operand.hbm [shape: bf16[1152,128], index: 1, kind: input, shape index: {}]
  %s2 = inlined_call_operand.vmem [shape: f32[1,128], index: 2, kind: input, shape index: {}]
  %s3 = inlined_call_operand.vmem [shape: f32[128,128], index: 3, kind: output, shape index: {}]
  %s4 = sld [smem:[#allocation0]]
  $region26: #{kernel_predictor_forward.3} parent=0
    _
  %s6 = ssub.s32 1, %s4
  %s7 = scalar_select 0, %s6, %s4
  $region1: #{kernel_predictor_forward.3} parent=0
    #allocation2 [shape = 'u8[294912]{0}', space=vmem, size = 0x48000, scoped, tag = 'input window, operand 1, single buffered']
    #allocation3 [shape = 's32[1]{0}', space=sflag, size = 0x4, scoped, tag = 'scoped memory for kernel_predictor_forward.3']
    %8 = vsyncpa [#allocation3], 0
    // Predicated region
    $region2: #{kernel_predictor_forward.3} parent=1 // pred_check
      _
    $region3: #{kernel_predictor_forward.3} parent=1 // pred_check_branch
      %10 = sbr.rel (0) target = $region5
    $region4: #{kernel_predictor_forward.3} parent=1 // pred_region
      _
    $region5: #{kernel_predictor_forward.3} parent=1 // pred_fallthru
      _
    // Predicated region
    $region6: #{kernel_predictor_forward.3} parent=1 // pred_check
      _
    $region7: #{kernel_predictor_forward.3} parent=1 // pred_check_branch
      %12 = sbr.rel (0) target = $region9
    $region8: #{kernel_predictor_forward.3} parent=1 // pred_region
      %s14 = ssub.s32 9216, 9216
      %15 = vsyncadd [#allocation3], %s14
      %s16 = sshll.u32 [#allocation2], 4
      %s17 = int_to_ptr.vmem [resolvable:$true] %s16
      %22 = dma.hbm_to_vmem [thread:$0]  %s1, 9216, %s17, [#allocation3], 64, 64, 4
    $region9: #{kernel_predictor_forward.3} parent=1 // pred_fallthru
      _
    // Predicated region
    $region10: #{kernel_predictor_forward.3} parent=1 // pred_check
      _
    $region11: #{kernel_predictor_forward.3} parent=1 // pred_check_branch
      %24 = sbr.rel (0) target = $region13
    $region12: #{kernel_predictor_forward.3} parent=1 // pred_region
      _
    $region13: #{kernel_predictor_forward.3} parent=1 // pred_fallthru
      _
    // Predicated region
    $region14: #{kernel_predictor_forward.3} parent=1 // pred_check
      _
    $region15: #{kernel_predictor_forward.3} parent=1 // pred_check_branch
      %26 = sbr.rel (0) target = $region17
    $region16: #{kernel_predictor_forward.3} parent=1 // pred_region
      %27 = dma.done [#allocation3], 9216
    $region17: #{kernel_predictor_forward.3} parent=1 // pred_fallthru
      _
    %v29 = vld [vmem:[%s0] sm:$0xff]
    %v30 = vld [vmem:[%s0 + $0x8] sm:$0xff]
    %v31 = vld [vmem:[%s0 + $0x10] sm:$0xff]
    %v32 = vld [vmem:[%s0 + $0x18] sm:$0xff]
    %v33 = vld [vmem:[%s0 + $0x20] sm:$0xf]
    %v34 = vld [vmem:[%s0 + $0x24] sm:$0xff]
    %v35 = vld [vmem:[%s0 + $0x2c] sm:$0xff]
    %v36 = vld [vmem:[%s0 + $0x34] sm:$0xff]
    %v37 = vld [vmem:[%s0 + $0x3c] sm:$0xff]
    %v38 = vld [vmem:[%s0 + $0x44] sm:$0xf]
    %v39 = vld [vmem:[%s0 + $0x48] sm:$0xff]
    %v40 = vld [vmem:[%s0 + $0x50] sm:$0xff]
    %v41 = vld [vmem:[%s0 + $0x58] sm:$0xff]
    %v42 = vld [vmem:[%s0 + $0x60] sm:$0xff]
    %v43 = vld [vmem:[%s0 + $0x68] sm:$0xf]
    %v44 = vld [vmem:[%s0 + $0x6c] sm:$0xff]
    %v45 = vld [vmem:[%s0 + $0x74] sm:$0xff]
    %v46 = vld [vmem:[%s0 + $0x7c] sm:$0xff]
    %v47 = vld [vmem:[%s0 + $0x84] sm:$0xff]
    %v48 = vld [vmem:[%s0 + $0x8c] sm:$0xf]
    %v49 = vld [vmem:[%s0 + $0x90] sm:$0xff]
    %v50 = vld [vmem:[%s0 + $0x98] sm:$0xff]
    %v51 = vld [vmem:[%s0 + $0xa0] sm:$0xff]
    %v52 = vld [vmem:[%s0 + $0xa8] sm:$0xff]
    %v53 = vld [vmem:[%s0 + $0xb0] sm:$0xf]
    %v54 = vld [vmem:[%s0 + $0xb4] sm:$0xff]
    %v55 = vld [vmem:[%s0 + $0xbc] sm:$0xff]
    %v56 = vld [vmem:[%s0 + $0xc4] sm:$0xff]
    %v57 = vld [vmem:[%s0 + $0xcc] sm:$0xff]
    %v58 = vld [vmem:[%s0 + $0xd4] sm:$0xf]
    %v59 = vld [vmem:[%s0 + $0xd8] sm:$0xff]
    %v60 = vld [vmem:[%s0 + $0xe0] sm:$0xff]
    %v61 = vld [vmem:[%s0 + $0xe8] sm:$0xff]
    %v62 = vld [vmem:[%s0 + $0xf0] sm:$0xff]
    %v63 = vld [vmem:[%s0 + $0xf8] sm:$0xf]
    %v64 = vld [vmem:[%s0 + $0xfc] sm:$0xff]
    %v65 = vld [vmem:[%s0 + $0x104] sm:$0xff]
    %v66 = vld [vmem:[%s0 + $0x10c] sm:$0xff]
    %v67 = vld [vmem:[%s0 + $0x114] sm:$0xff]
    %v68 = vld [vmem:[%s0 + $0x11c] sm:$0xf]
    %v69 = vld [vmem:[%s0 + $0x120] sm:$0xff]
    %v70 = vld [vmem:[%s0 + $0x128] sm:$0xff]
    %v71 = vld [vmem:[%s0 + $0x130] sm:$0xff]
    %v72 = vld [vmem:[%s0 + $0x138] sm:$0xff]
    %v73 = vld [vmem:[%s0 + $0x140] sm:$0xf]
    %v74 = vld [vmem:[%s0 + $0x144] sm:$0xff]
    %v75 = vld [vmem:[%s0 + $0x14c] sm:$0xff]
    %v76 = vld [vmem:[%s0 + $0x154] sm:$0xff]
    %v77 = vld [vmem:[%s0 + $0x15c] sm:$0xff]
    %v78 = vld [vmem:[%s0 + $0x164] sm:$0xf]
    %v79 = vld [vmem:[%s0 + $0x168] sm:$0xff]
    %v80 = vld [vmem:[%s0 + $0x170] sm:$0xff]
    %v81 = vld [vmem:[%s0 + $0x178] sm:$0xff]
    %v82 = vld [vmem:[%s0 + $0x180] sm:$0xff]
    %v83 = vld [vmem:[%s0 + $0x188] sm:$0xf]
    %v84 = vld [vmem:[%s0 + $0x18c] sm:$0xff]
    %v85 = vld [vmem:[%s0 + $0x194] sm:$0xff]
    %v86 = vld [vmem:[%s0 + $0x19c] sm:$0xff]
    %v87 = vld [vmem:[%s0 + $0x1a4] sm:$0xff]
    %v88 = vld [vmem:[%s0 + $0x1ac] sm:$0xf]
    %v89 = vld [vmem:[%s0 + $0x1b0] sm:$0xff]
    %v90 = vld [vmem:[%s0 + $0x1b8] sm:$0xff]
    %v91 = vld [vmem:[%s0 + $0x1c0] sm:$0xff]
    %v92 = vld [vmem:[%s0 + $0x1c8] sm:$0xff]
    %v93 = vld [vmem:[%s0 + $0x1d0] sm:$0xf]
    %v94 = vld [vmem:[%s0 + $0x1d4] sm:$0xff]
    %v95 = vld [vmem:[%s0 + $0x1dc] sm:$0xff]
    %v96 = vld [vmem:[%s0 + $0x1e4] sm:$0xff]
    %v97 = vld [vmem:[%s0 + $0x1ec] sm:$0xff]
    %v98 = vld [vmem:[%s0 + $0x1f4] sm:$0xf]
    %v99 = vld [vmem:[%s0 + $0x1f8] sm:$0xff]
    %v100 = vld [vmem:[%s0 + $0x200] sm:$0xff]
    %v101 = vld [vmem:[%s0 + $0x208] sm:$0xff]
    %v102 = vld [vmem:[%s0 + $0x210] sm:$0xff]
    %v103 = vld [vmem:[%s0 + $0x218] sm:$0xf]
    %v104 = vld [vmem:[%s0 + $0x21c] sm:$0xff]
    %v105 = vld [vmem:[%s0 + $0x224] sm:$0xff]
    %v106 = vld [vmem:[%s0 + $0x22c] sm:$0xff]
    %v107 = vld [vmem:[%s0 + $0x234] sm:$0xff]
    %v108 = vld [vmem:[%s0 + $0x23c] sm:$0xf]
    %v109 = vld [vmem:[#allocation2] sm:$0xf]
    %v110 = vld [vmem:[#allocation2 + $0x4] sm:$0xf]
    %v111 = vld [vmem:[#allocation2 + $0x8] sm:$0xf]
    %v112 = vld [vmem:[#allocation2 + $0xc] sm:$0xf]
    %v113 = vld [vmem:[#allocation2 + $0x10] sm:$0xf]
    %v114 = vld [vmem:[#allocation2 + $0x14] sm:$0xf]
    %v115 = vld [vmem:[#allocation2 + $0x18] sm:$0xf]
    %v116 = vld [vmem:[#allocation2 + $0x1c] sm:$0xf]
    %v117 = vld [vmem:[#allocation2 + $0x20] sm:$0xf]
    %v118 = vld [vmem:[#allocation2 + $0x24] sm:$0xf]
    %v119 = vld [vmem:[#allocation2 + $0x28] sm:$0xf]
    %v120 = vld [vmem:[#allocation2 + $0x2c] sm:$0xf]
    %v121 = vld [vmem:[#allocation2 + $0x30] sm:$0xf]
    %v122 = vld [vmem:[#allocation2 + $0x34] sm:$0xf]
    %v123 = vld [vmem:[#allocation2 + $0x38] sm:$0xf]
    %v124 = vld [vmem:[#allocation2 + $0x3c] sm:$0xf]
    %v125 = vld [vmem:[#allocation2 + $0x40] sm:$0xf]
    %v126 = vld [vmem:[#allocation2 + $0x44] sm:$0xf]
    %v127 = vld [vmem:[#allocation2 + $0x48] sm:$0xf]
    %v128 = vld [vmem:[#allocation2 + $0x4c] sm:$0xf]
    %v129 = vld [vmem:[#allocation2 + $0x50] sm:$0xf]
    %v130 = vld [vmem:[#allocation2 + $0x54] sm:$0xf]
    %v131 = vld [vmem:[#allocation2 + $0x58] sm:$0xf]
    %v132 = vld [vmem:[#allocation2 + $0x5c] sm:$0xf]
    %v133 = vld [vmem:[#allocation2 + $0x60] sm:$0xf]
    %v134 = vld [vmem:[#allocation2 + $0x64] sm:$0xf]
    %v135 = vld [vmem:[#allocation2 + $0x68] sm:$0xf]
    %v136 = vld [vmem:[#allocation2 + $0x6c] sm:$0xf]
    %v137 = vld [vmem:[#allocation2 + $0x70] sm:$0xf]
    %v138 = vld [vmem:[#allocation2 + $0x74] sm:$0xf]
    %v139 = vld [vmem:[#allocation2 + $0x78] sm:$0xf]
    %v140 = vld [vmem:[#allocation2 + $0x7c] sm:$0xf]
    %v141 = vld [vmem:[#allocation2 + $0x80] sm:$0xf]
    %v142 = vld [vmem:[#allocation2 + $0x84] sm:$0xf]
    %v143 = vld [vmem:[#allocation2 + $0x88] sm:$0xf]
    %v144 = vld [vmem:[#allocation2 + $0x8c] sm:$0xf]
    %v145 = vld [vmem:[#allocation2 + $0x90] sm:$0xf]
    %v146 = vld [vmem:[#allocation2 + $0x94] sm:$0xf]
    %v147 = vld [vmem:[#allocation2 + $0x98] sm:$0xf]
    %v148 = vld [vmem:[#allocation2 + $0x9c] sm:$0xf]
    %v149 = vld [vmem:[#allocation2 + $0xa0] sm:$0xf]
    %v150 = vld [vmem:[#allocation2 + $0xa4] sm:$0xf]
    %v151 = vld [vmem:[#allocation2 + $0xa8] sm:$0xf]
    %v152 = vld [vmem:[#allocation2 + $0xac] sm:$0xf]
    %v153 = vld [vmem:[#allocation2 + $0xb0] sm:$0xf]
    %v154 = vld [vmem:[#allocation2 + $0xb4] sm:$0xf]
    %v155 = vld [vmem:[#allocation2 + $0xb8] sm:$0xf]
    %v156 = vld [vmem:[#allocation2 + $0xbc] sm:$0xf]
    %v157 = vld [vmem:[#allocation2 + $0xc0] sm:$0xf]
    %v158 = vld [vmem:[#allocation2 + $0xc4] sm:$0xf]
    %v159 = vld [vmem:[#allocation2 + $0xc8] sm:$0xf]
    %v160 = vld [vmem:[#allocation2 + $0xcc] sm:$0xf]
    %v161 = vld [vmem:[#allocation2 + $0xd0] sm:$0xf]
    %v162 = vld [vmem:[#allocation2 + $0xd4] sm:$0xf]
    %v163 = vld [vmem:[#allocation2 + $0xd8] sm:$0xf]
    %v164 = vld [vmem:[#allocation2 + $0xdc] sm:$0xf]
    %v165 = vld [vmem:[#allocation2 + $0xe0] sm:$0xf]
    %v166 = vld [vmem:[#allocation2 + $0xe4] sm:$0xf]
    %v167 = vld [vmem:[#allocation2 + $0xe8] sm:$0xf]
    %v168 = vld [vmem:[#allocation2 + $0xec] sm:$0xf]
    %v169 = vld [vmem:[#allocation2 + $0xf0] sm:$0xf]
    %v170 = vld [vmem:[#allocation2 + $0xf4] sm:$0xf]
    %v171 = vld [vmem:[#allocation2 + $0xf8] sm:$0xf]
    %v172 = vld [vmem:[#allocation2 + $0xfc] sm:$0xf]
    %v173 = vld [vmem:[#allocation2 + $0x100] sm:$0xf]
    %v174 = vld [vmem:[#allocation2 + $0x104] sm:$0xf]
    %v175 = vld [vmem:[#allocation2 + $0x108] sm:$0xf]
    %v176 = vld [vmem:[#allocation2 + $0x10c] sm:$0xf]
    %v177 = vld [vmem:[#allocation2 + $0x110] sm:$0xf]
    %v178 = vld [vmem:[#allocation2 + $0x114] sm:$0xf]
    %v179 = vld [vmem:[#allocation2 + $0x118] sm:$0xf]
    %v180 = vld [vmem:[#allocation2 + $0x11c] sm:$0xf]
    %v181 = vld [vmem:[#allocation2 + $0x120] sm:$0xf]
    %v182 = vld [vmem:[#allocation2 + $0x124] sm:$0xf]
    %v183 = vld [vmem:[#allocation2 + $0x128] sm:$0xf]
    %v184 = vld [vmem:[#allocation2 + $0x12c] sm:$0xf]
    %v185 = vld [vmem:[#allocation2 + $0x130] sm:$0xf]
    %v186 = vld [vmem:[#allocation2 + $0x134] sm:$0xf]
    %v187 = vld [vmem:[#allocation2 + $0x138] sm:$0xf]
    %v188 = vld [vmem:[#allocation2 + $0x13c] sm:$0xf]
    %v189 = vld [vmem:[#allocation2 + $0x140] sm:$0xf]
    %v190 = vld [vmem:[#allocation2 + $0x144] sm:$0xf]
    %v191 = vld [vmem:[#allocation2 + $0x148] sm:$0xf]
    %v192 = vld [vmem:[#allocation2 + $0x14c] sm:$0xf]
    %v193 = vld [vmem:[#allocation2 + $0x150] sm:$0xf]
    %v194 = vld [vmem:[#allocation2 + $0x154] sm:$0xf]
    %v195 = vld [vmem:[#allocation2 + $0x158] sm:$0xf]
    %v196 = vld [vmem:[#allocation2 + $0x15c] sm:$0xf]
    %v197 = vld [vmem:[#allocation2 + $0x160] sm:$0xf]
    %v198 = vld [vmem:[#allocation2 + $0x164] sm:$0xf]
    %v199 = vld [vmem:[#allocation2 + $0x168] sm:$0xf]
    %v200 = vld [vmem:[#allocation2 + $0x16c] sm:$0xf]
    %v201 = vld [vmem:[#allocation2 + $0x170] sm:$0xf]
    %v202 = vld [vmem:[#allocation2 + $0x174] sm:$0xf]
    %v203 = vld [vmem:[#allocation2 + $0x178] sm:$0xf]
    %v204 = vld [vmem:[#allocation2 + $0x17c] sm:$0xf]
    %v205 = vld [vmem:[#allocation2 + $0x180] sm:$0xf]
    %v206 = vld [vmem:[#allocation2 + $0x184] sm:$0xf]
    %v207 = vld [vmem:[#allocation2 + $0x188] sm:$0xf]
    %v208 = vld [vmem:[#allocation2 + $0x18c] sm:$0xf]
    %v209 = vld [vmem:[#allocation2 + $0x190] sm:$0xf]
    %v210 = vld [vmem:[#allocation2 + $0x194] sm:$0xf]
    %v211 = vld [vmem:[#allocation2 + $0x198] sm:$0xf]
    %v212 = vld [vmem:[#allocation2 + $0x19c] sm:$0xf]
    %v213 = vld [vmem:[#allocation2 + $0x1a0] sm:$0xf]
    %v214 = vld [vmem:[#allocation2 + $0x1a4] sm:$0xf]
    %v215 = vld [vmem:[#allocation2 + $0x1a8] sm:$0xf]
    %v216 = vld [vmem:[#allocation2 + $0x1ac] sm:$0xf]
    %v217 = vld [vmem:[#allocation2 + $0x1b0] sm:$0xf]
    %v218 = vld [vmem:[#allocation2 + $0x1b4] sm:$0xf]
    %v219 = vld [vmem:[#allocation2 + $0x1b8] sm:$0xf]
    %v220 = vld [vmem:[#allocation2 + $0x1bc] sm:$0xf]
    %v221 = vld [vmem:[#allocation2 + $0x1c0] sm:$0xf]
    %v222 = vld [vmem:[#allocation2 + $0x1c4] sm:$0xf]
    %v223 = vld [vmem:[#allocation2 + $0x1c8] sm:$0xf]
    %v224 = vld [vmem:[#allocation2 + $0x1cc] sm:$0xf]
    %v225 = vld [vmem:[#allocation2 + $0x1d0] sm:$0xf]
    %v226 = vld [vmem:[#allocation2 + $0x1d4] sm:$0xf]
    %v227 = vld [vmem:[#allocation2 + $0x1d8] sm:$0xf]
    %v228 = vld [vmem:[#allocation2 + $0x1dc] sm:$0xf]
    %v229 = vld [vmem:[#allocation2 + $0x1e0] sm:$0xf]
    %v230 = vld [vmem:[#allocation2 + $0x1e4] sm:$0xf]
    %v231 = vld [vmem:[#allocation2 + $0x1e8] sm:$0xf]
    %v232 = vld [vmem:[#allocation2 + $0x1ec] sm:$0xf]
    %v233 = vld [vmem:[#allocation2 + $0x1f0] sm:$0xf]
    %v234 = vld [vmem:[#allocation2 + $0x1f4] sm:$0xf]
    %v235 = vld [vmem:[#allocation2 + $0x1f8] sm:$0xf]
    %v236 = vld [vmem:[#allocation2 + $0x1fc] sm:$0xf]
    %v237 = vld [vmem:[#allocation2 + $0x200] sm:$0xf]
    %v238 = vld [vmem:[#allocation2 + $0x204] sm:$0xf]
    %v239 = vld [vmem:[#allocation2 + $0x208] sm:$0xf]
    %v240 = vld [vmem:[#allocation2 + $0x20c] sm:$0xf]
    %v241 = vld [vmem:[#allocation2 + $0x210] sm:$0xf]
    %v242 = vld [vmem:[#allocation2 + $0x214] sm:$0xf]
    %v243 = vld [vmem:[#allocation2 + $0x218] sm:$0xf]
    %v244 = vld [vmem:[#allocation2 + $0x21c] sm:$0xf]
    %v245 = vld [vmem:[#allocation2 + $0x220] sm:$0xf]
    %v246 = vld [vmem:[#allocation2 + $0x224] sm:$0xf]
    %v247 = vld [vmem:[#allocation2 + $0x228] sm:$0xf]
    %v248 = vld [vmem:[#allocation2 + $0x22c] sm:$0xf]
    %v249 = vld [vmem:[#allocation2 + $0x230] sm:$0xf]
    %v250 = vld [vmem:[#allocation2 + $0x234] sm:$0xf]
    %v251 = vld [vmem:[#allocation2 + $0x238] sm:$0xf]
    %v252 = vld [vmem:[#allocation2 + $0x23c] sm:$0xf]
    %v253 = vld [vmem:[%s2] sm:$0x1]
    %v255 = vlaneseq
    %v256 = vshrl.u32 %v255, 7
    %v257 = vsub.s32 0, %v256
    %v258 = vrot.slane %v253, %v257
    %v340 = vunpack.c.l.b16 %v29
    %v341 = vunpack.c.h.b16 %v29
    %v342 = vunpack.c.l.b16 %v30
    %v343 = vunpack.c.h.b16 %v30
    %v344 = vunpack.c.l.b16 %v31
    %v345 = vunpack.c.h.b16 %v31
    %v346 = vunpack.c.l.b16 %v32
    %v347 = vunpack.c.h.b16 %v32
    %v348 = vunpack.c.l.b16 %v33
    %v349 = vunpack.c.l.b16 %v34
    %v350 = vunpack.c.h.b16 %v34
    %v351 = vunpack.c.l.b16 %v35
    %v352 = vunpack.c.h.b16 %v35
    %v353 = vunpack.c.l.b16 %v36
    %v354 = vunpack.c.h.b16 %v36
    %v355 = vunpack.c.l.b16 %v37
    %v356 = vunpack.c.h.b16 %v37
    %v357 = vunpack.c.l.b16 %v38
    %v358 = vunpack.c.l.b16 %v39
    %v359 = vunpack.c.h.b16 %v39
    %v360 = vunpack.c.l.b16 %v40
    %v361 = vunpack.c.h.b16 %v40
    %v362 = vunpack.c.l.b16 %v41
    %v363 = vunpack.c.h.b16 %v41
    %v364 = vunpack.c.l.b16 %v42
    %v365 = vunpack.c.h.b16 %v42
    %v366 = vunpack.c.l.b16 %v43
    %v367 = vunpack.c.l.b16 %v44
    %v368 = vunpack.c.h.b16 %v44
    %v369 = vunpack.c.l.b16 %v45
    %v370 = vunpack.c.h.b16 %v45
    %v371 = vunpack.c.l.b16 %v46
    %v372 = vunpack.c.h.b16 %v46
    %v373 = vunpack.c.l.b16 %v47
    %v374 = vunpack.c.h.b16 %v47
    %v375 = vunpack.c.l.b16 %v48
    %v376 = vunpack.c.l.b16 %v49
    %v377 = vunpack.c.h.b16 %v49
    %v378 = vunpack.c.l.b16 %v50
    %v379 = vunpack.c.h.b16 %v50
    %v380 = vunpack.c.l.b16 %v51
    %v381 = vunpack.c.h.b16 %v51
    %v382 = vunpack.c.l.b16 %v52
    %v383 = vunpack.c.h.b16 %v52
    %v384 = vunpack.c.l.b16 %v53
    %v385 = vunpack.c.l.b16 %v54
    %v386 = vunpack.c.h.b16 %v54
    %v387 = vunpack.c.l.b16 %v55
    %v388 = vunpack.c.h.b16 %v55
    %v389 = vunpack.c.l.b16 %v56
    %v390 = vunpack.c.h.b16 %v56
    %v391 = vunpack.c.l.b16 %v57
    %v392 = vunpack.c.h.b16 %v57
    %v393 = vunpack.c.l.b16 %v58
    %v394 = vunpack.c.l.b16 %v59
    %v395 = vunpack.c.h.b16 %v59
    %v396 = vunpack.c.l.b16 %v60
    %v397 = vunpack.c.h.b16 %v60
    %v398 = vunpack.c.l.b16 %v61
    %v399 = vunpack.c.h.b16 %v61
    %v400 = vunpack.c.l.b16 %v62
    %v401 = vunpack.c.h.b16 %v62
    %v402 = vunpack.c.l.b16 %v63
    %v403 = vunpack.c.l.b16 %v64
    %v404 = vunpack.c.h.b16 %v64
    %v405 = vunpack.c.l.b16 %v65
    %v406 = vunpack.c.h.b16 %v65
    %v407 = vunpack.c.l.b16 %v66
    %v408 = vunpack.c.h.b16 %v66
    %v409 = vunpack.c.l.b16 %v67
    %v410 = vunpack.c.h.b16 %v67
    %v411 = vunpack.c.l.b16 %v68
    %v412 = vunpack.c.l.b16 %v69
    %v413 = vunpack.c.h.b16 %v69
    %v414 = vunpack.c.l.b16 %v70
    %v415 = vunpack.c.h.b16 %v70
    %v416 = vunpack.c.l.b16 %v71
    %v417 = vunpack.c.h.b16 %v71
    %v418 = vunpack.c.l.b16 %v72
    %v419 = vunpack.c.h.b16 %v72
    %v420 = vunpack.c.l.b16 %v73
    %v421 = vunpack.c.l.b16 %v74
    %v422 = vunpack.c.h.b16 %v74
    %v423 = vunpack.c.l.b16 %v75
    %v424 = vunpack.c.h.b16 %v75
    %v425 = vunpack.c.l.b16 %v76
    %v426 = vunpack.c.h.b16 %v76
    %v427 = vunpack.c.l.b16 %v77
    %v428 = vunpack.c.h.b16 %v77
    %v429 = vunpack.c.l.b16 %v78
    %v430 = vunpack.c.l.b16 %v79
    %v431 = vunpack.c.h.b16 %v79
    %v432 = vunpack.c.l.b16 %v80
    %v433 = vunpack.c.h.b16 %v80
    %v434 = vunpack.c.l.b16 %v81
    %v435 = vunpack.c.h.b16 %v81
    %v436 = vunpack.c.l.b16 %v82
    %v437 = vunpack.c.h.b16 %v82
    %v438 = vunpack.c.l.b16 %v83
    %v439 = vunpack.c.l.b16 %v84
    %v440 = vunpack.c.h.b16 %v84
    %v441 = vunpack.c.l.b16 %v85
    %v442 = vunpack.c.h.b16 %v85
    %v443 = vunpack.c.l.b16 %v86
    %v444 = vunpack.c.h.b16 %v86
    %v445 = vunpack.c.l.b16 %v87
    %v446 = vunpack.c.h.b16 %v87
    %v447 = vunpack.c.l.b16 %v88
    %v448 = vunpack.c.l.b16 %v89
    %v449 = vunpack.c.h.b16 %v89
    %v450 = vunpack.c.l.b16 %v90
    %v451 = vunpack.c.h.b16 %v90
    %v452 = vunpack.c.l.b16 %v91
    %v453 = vunpack.c.h.b16 %v91
    %v454 = vunpack.c.l.b16 %v92
    %v455 = vunpack.c.h.b16 %v92
    %v456 = vunpack.c.l.b16 %v93
    %v457 = vunpack.c.l.b16 %v94
    %v458 = vunpack.c.h.b16 %v94
    %v459 = vunpack.c.l.b16 %v95
    %v460 = vunpack.c.h.b16 %v95
    %v461 = vunpack.c.l.b16 %v96
    %v462 = vunpack.c.h.b16 %v96
    %v463 = vunpack.c.l.b16 %v97
    %v464 = vunpack.c.h.b16 %v97
    %v465 = vunpack.c.l.b16 %v98
    %v466 = vunpack.c.l.b16 %v99
    %v467 = vunpack.c.h.b16 %v99
    %v468 = vunpack.c.l.b16 %v100
    %v469 = vunpack.c.h.b16 %v100
    %v470 = vunpack.c.l.b16 %v101
    %v471 = vunpack.c.h.b16 %v101
    %v472 = vunpack.c.l.b16 %v102
    %v473 = vunpack.c.h.b16 %v102
    %v474 = vunpack.c.l.b16 %v103
    %v475 = vunpack.c.l.b16 %v104
    %v476 = vunpack.c.h.b16 %v104
    %v477 = vunpack.c.l.b16 %v105
    %v478 = vunpack.c.h.b16 %v105
    %v479 = vunpack.c.l.b16 %v106
    %v480 = vunpack.c.h.b16 %v106
    %v481 = vunpack.c.l.b16 %v107
    %v482 = vunpack.c.h.b16 %v107
    %v483 = vunpack.c.l.b16 %v108
    %v484 = vpack.c.b16 %v349, %v340
    %v485 = vpack.c.b16 %v350, %v341
    %v486 = vpack.c.b16 %v351, %v342
    %v487 = vpack.c.b16 %v352, %v343
    %v488 = vpack.c.b16 %v353, %v344
    %v489 = vpack.c.b16 %v354, %v345
    %v490 = vpack.c.b16 %v355, %v346
    %v491 = vpack.c.b16 %v356, %v347
    %v492 = vpack.c.b16 %v357, %v348
    %v493 = vpack.c.b16 %v367, %v358
    %v494 = vpack.c.b16 %v368, %v359
    %v495 = vpack.c.b16 %v369, %v360
    %v496 = vpack.c.b16 %v370, %v361
    %v497 = vpack.c.b16 %v371, %v362
    %v498 = vpack.c.b16 %v372, %v363
    %v499 = vpack.c.b16 %v373, %v364
    %v500 = vpack.c.b16 %v374, %v365
    %v501 = vpack.c.b16 %v375, %v366
    %v502 = vpack.c.b16 %v385, %v376
    %v503 = vpack.c.b16 %v386, %v377
    %v504 = vpack.c.b16 %v387, %v378
    %v505 = vpack.c.b16 %v388, %v379
    %v506 = vpack.c.b16 %v389, %v380
    %v507 = vpack.c.b16 %v390, %v381
    %v508 = vpack.c.b16 %v391, %v382
    %v509 = vpack.c.b16 %v392, %v383
    %v510 = vpack.c.b16 %v393, %v384
    %v511 = vpack.c.b16 %v403, %v394
    %v512 = vpack.c.b16 %v404, %v395
    %v513 = vpack.c.b16 %v405, %v396
    %v514 = vpack.c.b16 %v406, %v397
    %v515 = vpack.c.b16 %v407, %v398
    %v516 = vpack.c.b16 %v408, %v399
    %v517 = vpack.c.b16 %v409, %v400
    %v518 = vpack.c.b16 %v410, %v401
    %v519 = vpack.c.b16 %v411, %v402
    %v520 = vpack.c.b16 %v421, %v412
    %v521 = vpack.c.b16 %v422, %v413
    %v522 = vpack.c.b16 %v423, %v414
    %v523 = vpack.c.b16 %v424, %v415
    %v524 = vpack.c.b16 %v425, %v416
    %v525 = vpack.c.b16 %v426, %v417
    %v526 = vpack.c.b16 %v427, %v418
    %v527 = vpack.c.b16 %v428, %v419
    %v528 = vpack.c.b16 %v429, %v420
    %v529 = vpack.c.b16 %v439, %v430
    %v530 = vpack.c.b16 %v440, %v431
    %v531 = vpack.c.b16 %v441, %v432
    %v532 = vpack.c.b16 %v442, %v433
    %v533 = vpack.c.b16 %v443, %v434
    %v534 = vpack.c.b16 %v444, %v435
    %v535 = vpack.c.b16 %v445, %v436
    %v536 = vpack.c.b16 %v446, %v437
    %v537 = vpack.c.b16 %v447, %v438
    %v538 = vpack.c.b16 %v457, %v448
    %v539 = vpack.c.b16 %v458, %v449
    %v540 = vpack.c.b16 %v459, %v450
    %v541 = vpack.c.b16 %v460, %v451
    %v542 = vpack.c.b16 %v461, %v452
    %v543 = vpack.c.b16 %v462, %v453
    %v544 = vpack.c.b16 %v463, %v454
    %v545 = vpack.c.b16 %v464, %v455
    %v546 = vpack.c.b16 %v465, %v456
    %v547 = vpack.c.b16 %v475, %v466
    %v548 = vpack.c.b16 %v476, %v467
    %v549 = vpack.c.b16 %v477, %v468
    %v550 = vpack.c.b16 %v478, %v469
    %v551 = vpack.c.b16 %v479, %v470
    %v552 = vpack.c.b16 %v480, %v471
    %v553 = vpack.c.b16 %v481, %v472
    %v554 = vpack.c.b16 %v482, %v473
    %v555 = vpack.c.b16 %v483, %v474
    %v772 = vunpack.c.l.b16 %v109
    %v773 = vunpack.c.l.b16 %v110
    %v774 = vunpack.c.l.b16 %v111
    %v775 = vunpack.c.l.b16 %v112
    %v776 = vunpack.c.l.b16 %v113
    %v777 = vunpack.c.l.b16 %v114
    %v778 = vunpack.c.l.b16 %v115
    %v779 = vunpack.c.l.b16 %v116
    %v780 = vunpack.c.l.b16 %v117
    %v781 = vunpack.c.l.b16 %v118
    %v782 = vunpack.c.l.b16 %v119
    %v783 = vunpack.c.l.b16 %v120
    %v784 = vunpack.c.l.b16 %v121
    %v785 = vunpack.c.l.b16 %v122
    %v786 = vunpack.c.l.b16 %v123
    %v787 = vunpack.c.l.b16 %v124
    %v788 = vunpack.c.l.b16 %v125
    %v789 = vunpack.c.l.b16 %v126
    %v790 = vunpack.c.l.b16 %v127
    %v791 = vunpack.c.l.b16 %v128
    %v792 = vunpack.c.l.b16 %v129
    %v793 = vunpack.c.l.b16 %v130
    %v794 = vunpack.c.l.b16 %v131
    %v795 = vunpack.c.l.b16 %v132
    %v796 = vunpack.c.l.b16 %v133
    %v797 = vunpack.c.l.b16 %v134
    %v798 = vunpack.c.l.b16 %v135
    %v799 = vunpack.c.l.b16 %v136
    %v800 = vunpack.c.l.b16 %v137
    %v801 = vunpack.c.l.b16 %v138
    %v802 = vunpack.c.l.b16 %v139
    %v803 = vunpack.c.l.b16 %v140
    %v804 = vunpack.c.l.b16 %v141
    %v805 = vunpack.c.l.b16 %v142
    %v806 = vunpack.c.l.b16 %v143
    %v807 = vunpack.c.l.b16 %v144
    %v808 = vunpack.c.l.b16 %v145
    %v809 = vunpack.c.l.b16 %v146
    %v810 = vunpack.c.l.b16 %v147
    %v811 = vunpack.c.l.b16 %v148
    %v812 = vunpack.c.l.b16 %v149
    %v813 = vunpack.c.l.b16 %v150
    %v814 = vunpack.c.l.b16 %v151
    %v815 = vunpack.c.l.b16 %v152
    %v816 = vunpack.c.l.b16 %v153
    %v817 = vunpack.c.l.b16 %v154
    %v818 = vunpack.c.l.b16 %v155
    %v819 = vunpack.c.l.b16 %v156
    %v820 = vunpack.c.l.b16 %v157
    %v821 = vunpack.c.l.b16 %v158
    %v822 = vunpack.c.l.b16 %v159
    %v823 = vunpack.c.l.b16 %v160
    %v824 = vunpack.c.l.b16 %v161
    %v825 = vunpack.c.l.b16 %v162
    %v826 = vunpack.c.l.b16 %v163
    %v827 = vunpack.c.l.b16 %v164
    %v828 = vunpack.c.l.b16 %v165
    %v829 = vunpack.c.l.b16 %v166
    %v830 = vunpack.c.l.b16 %v167
    %v831 = vunpack.c.l.b16 %v168
    %v832 = vunpack.c.l.b16 %v169
    %v833 = vunpack.c.l.b16 %v170
    %v834 = vunpack.c.l.b16 %v171
    %v835 = vunpack.c.l.b16 %v172
    %v836 = vunpack.c.l.b16 %v173
    %v837 = vunpack.c.l.b16 %v174
    %v838 = vunpack.c.l.b16 %v175
    %v839 = vunpack.c.l.b16 %v176
    %v840 = vunpack.c.l.b16 %v177
    %v841 = vunpack.c.l.b16 %v178
    %v842 = vunpack.c.l.b16 %v179
    %v843 = vunpack.c.l.b16 %v180
    %v844 = vunpack.c.l.b16 %v181
    %v845 = vunpack.c.l.b16 %v182
    %v846 = vunpack.c.l.b16 %v183
    %v847 = vunpack.c.l.b16 %v184
    %v848 = vunpack.c.l.b16 %v185
    %v849 = vunpack.c.l.b16 %v186
    %v850 = vunpack.c.l.b16 %v187
    %v851 = vunpack.c.l.b16 %v188
    %v852 = vunpack.c.l.b16 %v189
    %v853 = vunpack.c.l.b16 %v190
    %v854 = vunpack.c.l.b16 %v191
    %v855 = vunpack.c.l.b16 %v192
    %v856 = vunpack.c.l.b16 %v193
    %v857 = vunpack.c.l.b16 %v194
    %v858 = vunpack.c.l.b16 %v195
    %v859 = vunpack.c.l.b16 %v196
    %v860 = vunpack.c.l.b16 %v197
    %v861 = vunpack.c.l.b16 %v198
    %v862 = vunpack.c.l.b16 %v199
    %v863 = vunpack.c.l.b16 %v200
    %v864 = vunpack.c.l.b16 %v201
    %v865 = vunpack.c.l.b16 %v202
    %v866 = vunpack.c.l.b16 %v203
    %v867 = vunpack.c.l.b16 %v204
    %v868 = vunpack.c.l.b16 %v205
    %v869 = vunpack.c.l.b16 %v206
    %v870 = vunpack.c.l.b16 %v207
    %v871 = vunpack.c.l.b16 %v208
    %v872 = vunpack.c.l.b16 %v209
    %v873 = vunpack.c.l.b16 %v210
    %v874 = vunpack.c.l.b16 %v211
    %v875 = vunpack.c.l.b16 %v212
    %v876 = vunpack.c.l.b16 %v213
    %v877 = vunpack.c.l.b16 %v214
    %v878 = vunpack.c.l.b16 %v215
    %v879 = vunpack.c.l.b16 %v216
    %v880 = vunpack.c.l.b16 %v217
    %v881 = vunpack.c.l.b16 %v218
    %v882 = vunpack.c.l.b16 %v219
    %v883 = vunpack.c.l.b16 %v220
    %v884 = vunpack.c.l.b16 %v221
    %v885 = vunpack.c.l.b16 %v222
    %v886 = vunpack.c.l.b16 %v223
    %v887 = vunpack.c.l.b16 %v224
    %v888 = vunpack.c.l.b16 %v225
    %v889 = vunpack.c.l.b16 %v226
    %v890 = vunpack.c.l.b16 %v227
    %v891 = vunpack.c.l.b16 %v228
    %v892 = vunpack.c.l.b16 %v229
    %v893 = vunpack.c.l.b16 %v230
    %v894 = vunpack.c.l.b16 %v231
    %v895 = vunpack.c.l.b16 %v232
    %v896 = vunpack.c.l.b16 %v233
    %v897 = vunpack.c.l.b16 %v234
    %v898 = vunpack.c.l.b16 %v235
    %v899 = vunpack.c.l.b16 %v236
    %v900 = vunpack.c.l.b16 %v237
    %v901 = vunpack.c.l.b16 %v238
    %v902 = vunpack.c.l.b16 %v239
    %v903 = vunpack.c.l.b16 %v240
    %v904 = vunpack.c.l.b16 %v241
    %v905 = vunpack.c.l.b16 %v242
    %v906 = vunpack.c.l.b16 %v243
    %v907 = vunpack.c.l.b16 %v244
    %v908 = vunpack.c.l.b16 %v245
    %v909 = vunpack.c.l.b16 %v246
    %v910 = vunpack.c.l.b16 %v247
    %v911 = vunpack.c.l.b16 %v248
    %v912 = vunpack.c.l.b16 %v249
    %v913 = vunpack.c.l.b16 %v250
    %v914 = vunpack.c.l.b16 %v251
    %v915 = vunpack.c.l.b16 %v252
    %v916 = vpack.c.b16 %v773, %v772
    %v917 = vpack.c.b16 %v775, %v774
    %v918 = vpack.c.b16 %v777, %v776
    %v919 = vpack.c.b16 %v779, %v778
    %v920 = vpack.c.b16 %v781, %v780
    %v921 = vpack.c.b16 %v783, %v782
    %v922 = vpack.c.b16 %v785, %v784
    %v923 = vpack.c.b16 %v787, %v786
    %v924 = vpack.c.b16 %v789, %v788
    %v925 = vpack.c.b16 %v791, %v790
    %v926 = vpack.c.b16 %v793, %v792
    %v927 = vpack.c.b16 %v795, %v794
    %v928 = vpack.c.b16 %v797, %v796
    %v929 = vpack.c.b16 %v799, %v798
    %v930 = vpack.c.b16 %v801, %v800
    %v931 = vpack.c.b16 %v803, %v802
    %v932 = vpack.c.b16 %v805, %v804
    %v933 = vpack.c.b16 %v807, %v806
    %v934 = vpack.c.b16 %v809, %v808
    %v935 = vpack.c.b16 %v811, %v810
    %v936 = vpack.c.b16 %v813, %v812
    %v937 = vpack.c.b16 %v815, %v814
    %v938 = vpack.c.b16 %v817, %v816
    %v939 = vpack.c.b16 %v819, %v818
    %v940 = vpack.c.b16 %v821, %v820
    %v941 = vpack.c.b16 %v823, %v822
    %v942 = vpack.c.b16 %v825, %v824
    %v943 = vpack.c.b16 %v827, %v826
    %v944 = vpack.c.b16 %v829, %v828
    %v945 = vpack.c.b16 %v831, %v830
    %v946 = vpack.c.b16 %v833, %v832
    %v947 = vpack.c.b16 %v835, %v834
    %v948 = vpack.c.b16 %v837, %v836
    %v949 = vpack.c.b16 %v839, %v838
    %v950 = vpack.c.b16 %v841, %v840
    %v951 = vpack.c.b16 %v843, %v842
    %v952 = vpack.c.b16 %v845, %v844
    %v953 = vpack.c.b16 %v847, %v846
    %v954 = vpack.c.b16 %v849, %v848
    %v955 = vpack.c.b16 %v851, %v850
    %v956 = vpack.c.b16 %v853, %v852
    %v957 = vpack.c.b16 %v855, %v854
    %v958 = vpack.c.b16 %v857, %v856
    %v959 = vpack.c.b16 %v859, %v858
    %v960 = vpack.c.b16 %v861, %v860
    %v961 = vpack.c.b16 %v863, %v862
    %v962 = vpack.c.b16 %v865, %v864
    %v963 = vpack.c.b16 %v867, %v866
    %v964 = vpack.c.b16 %v869, %v868
    %v965 = vpack.c.b16 %v871, %v870
    %v966 = vpack.c.b16 %v873, %v872
    %v967 = vpack.c.b16 %v875, %v874
    %v968 = vpack.c.b16 %v877, %v876
    %v969 = vpack.c.b16 %v879, %v878
    %v970 = vpack.c.b16 %v881, %v880
    %v971 = vpack.c.b16 %v883, %v882
    %v972 = vpack.c.b16 %v885, %v884
    %v973 = vpack.c.b16 %v887, %v886
    %v974 = vpack.c.b16 %v889, %v888
    %v975 = vpack.c.b16 %v891, %v890
    %v976 = vpack.c.b16 %v893, %v892
    %v977 = vpack.c.b16 %v895, %v894
    %v978 = vpack.c.b16 %v897, %v896
    %v979 = vpack.c.b16 %v899, %v898
    %v980 = vpack.c.b16 %v901, %v900
    %v981 = vpack.c.b16 %v903, %v902
    %v982 = vpack.c.b16 %v905, %v904
    %v983 = vpack.c.b16 %v907, %v906
    %v984 = vpack.c.b16 %v909, %v908
    %v985 = vpack.c.b16 %v911, %v910
    %v986 = vpack.c.b16 %v913, %v912
    %v987 = vpack.c.b16 %v915, %v914
    %1060 = vmatprep.subr.bf16.mxu0 0
    %1061 = vmatpush1.bf16.msra.mxu0 %v923
    %1062 = vmatprep.subr.bf16.mxu0 0
    %1063 = vmatpush1.bf16.msra.mxu0 %v922
    %1064 = vmatprep.subr.bf16.mxu0 0
    %1065 = vmatpush1.bf16.msra.mxu0 %v921
    %1066 = vmatprep.subr.bf16.mxu0 0
    %1067 = vmatpush1.bf16.msra.mxu0 %v920
    %1068 = vmatprep.subr.bf16.mxu0 0
    %1069 = vmatpush1.bf16.msra.mxu0 %v919
    %1070 = vmatprep.subr.bf16.mxu0 0
    %1071 = vmatpush1.bf16.msra.mxu0 %v918
    %1072 = vmatprep.subr.bf16.mxu0 0
    %1073 = vmatpush1.bf16.msra.mxu0 %v917
    %1074 = vmatprep.subr.bf16.mxu0 0
    %1075 = vmatpush1.bf16.msra.mxu0 %v916
    %1076 = vmatprep.subr.bf16.mxu0 0
    %1077 = vmatpush2.bf16.msra.mxu0 %v931
    %1078 = vmatprep.subr.bf16.mxu0 0
    %1079 = vmatpush2.bf16.msra.mxu0 %v930
    %1080 = vmatprep.subr.bf16.mxu0 0
    %1081 = vmatpush2.bf16.msra.mxu0 %v929
    %1082 = vmatprep.subr.bf16.mxu0 0
    %1083 = vmatpush2.bf16.msra.mxu0 %v928
    %1084 = vmatprep.subr.bf16.mxu0 0
    %1085 = vmatpush2.bf16.msra.mxu0 %v927
    %1086 = vmatprep.subr.bf16.mxu0 0
    %1087 = vmatpush2.bf16.msra.mxu0 %v926
    %1088 = vmatprep.subr.bf16.mxu0 0
    %1089 = vmatpush2.bf16.msra.mxu0 %v925
    %1090 = vmatprep.subr.bf16.mxu0 0
    %1091 = vmatpush2.bf16.msra.mxu0 %v924
    %1092 = vmatprep.mubr.bf16.mxu0 %v485
    %1093 = vmatmul.mubr.bf16.gmra.mxu0 %v484
    %v1094 = vpop.f32.mrf.mxu0
    %v1095 = vadd.f32 %v258, %v1094
    %v1096 = vpop.f32.mrf.mxu0
    %v1097 = vpop.f32.mrf.mxu0
    %v1098 = vadd.f32 %v258, %v1097
    %v1099 = vpop.f32.mrf.mxu0
    %1100 = vmatprep.mubr.bf16.mxu0 %v494
    %1101 = vmatmul.mubr.bf16.gmra.mxu0 %v493
    %v1102 = vpop.f32.mrf.mxu0
    %v1103 = vadd.f32 %v258, %v1102
    %v1104 = vpop.f32.mrf.mxu0
    %v1105 = vpop.f32.mrf.mxu0
    %v1106 = vadd.f32 %v258, %v1105
    %v1107 = vpop.f32.mrf.mxu0
    %1108 = vmatprep.mubr.bf16.mxu0 %v503
    %1109 = vmatmul.mubr.bf16.gmra.mxu0 %v502
    %v1110 = vpop.f32.mrf.mxu0
    %v1111 = vadd.f32 %v258, %v1110
    %v1112 = vpop.f32.mrf.mxu0
    %v1113 = vpop.f32.mrf.mxu0
    %v1114 = vadd.f32 %v258, %v1113
    %v1115 = vpop.f32.mrf.mxu0
    %1116 = vmatprep.mubr.bf16.mxu0 %v512
    %1117 = vmatmul.mubr.bf16.gmra.mxu0 %v511
    %v1118 = vpop.f32.mrf.mxu0
    %v1119 = vadd.f32 %v258, %v1118
    %v1120 = vpop.f32.mrf.mxu0
    %v1121 = vpop.f32.mrf.mxu0
    %v1122 = vadd.f32 %v258, %v1121
    %v1123 = vpop.f32.mrf.mxu0
    %1124 = vmatprep.mubr.bf16.mxu0 %v521
    %1125 = vmatmul.mubr.bf16.gmra.mxu0 %v520
    %v1126 = vpop.f32.mrf.mxu0
    %v1127 = vadd.f32 %v258, %v1126
    %v1128 = vpop.f32.mrf.mxu0
    %v1129 = vpop.f32.mrf.mxu0
    %v1130 = vadd.f32 %v258, %v1129
    %v1131 = vpop.f32.mrf.mxu0
    %1132 = vmatprep.mubr.bf16.mxu0 %v530
    %1133 = vmatmul.mubr.bf16.gmra.mxu0 %v529
    %v1134 = vpop.f32.mrf.mxu0
    %v1135 = vadd.f32 %v258, %v1134
    %v1136 = vpop.f32.mrf.mxu0
    %v1137 = vpop.f32.mrf.mxu0
    %v1138 = vadd.f32 %v258, %v1137
    %v1139 = vpop.f32.mrf.mxu0
    %1140 = vmatprep.mubr.bf16.mxu0 %v539
    %1141 = vmatmul.mubr.bf16.gmra.mxu0 %v538
    %v1142 = vpop.f32.mrf.mxu0
    %v1143 = vadd.f32 %v258, %v1142
    %v1144 = vpop.f32.mrf.mxu0
    %v1145 = vpop.f32.mrf.mxu0
    %v1146 = vadd.f32 %v258, %v1145
    %v1147 = vpop.f32.mrf.mxu0
    %1148 = vmatprep.mubr.bf16.mxu0 %v548
    %1149 = vmatmul.mubr.bf16.gmra.mxu0 %v547
    %v1150 = vpop.f32.mrf.mxu0
    %v1151 = vadd.f32 %v258, %v1150
    %v1152 = vpop.f32.mrf.mxu0
    %v1153 = vpop.f32.mrf.mxu0
    %v1154 = vadd.f32 %v258, %v1153
    %v1155 = vpop.f32.mrf.mxu0
    %1156 = vdwg.mxu0
    %1157 = vmatprep.subr.bf16.mxu0 0
    %1158 = vmatpush1.bf16.msra.mxu0 %v939
    %1159 = vmatprep.subr.bf16.mxu0 0
    %1160 = vmatpush1.bf16.msra.mxu0 %v938
    %1161 = vmatprep.subr.bf16.mxu0 0
    %1162 = vmatpush1.bf16.msra.mxu0 %v937
    %1163 = vmatprep.subr.bf16.mxu0 0
    %1164 = vmatpush1.bf16.msra.mxu0 %v936
    %1165 = vmatprep.subr.bf16.mxu0 0
    %1166 = vmatpush1.bf16.msra.mxu0 %v935
    %1167 = vmatprep.subr.bf16.mxu0 0
    %1168 = vmatpush1.bf16.msra.mxu0 %v934
    %1169 = vmatprep.subr.bf16.mxu0 0
    %1170 = vmatpush1.bf16.msra.mxu0 %v933
    %1171 = vmatprep.subr.bf16.mxu0 0
    %1172 = vmatpush1.bf16.msra.mxu0 %v932
    %1173 = vmatprep.subr.bf16.mxu0 0
    %1174 = vmatpush2.bf16.msra.mxu0 %v947
    %1175 = vmatprep.subr.bf16.mxu0 0
    %1176 = vmatpush2.bf16.msra.mxu0 %v946
    %1177 = vmatprep.subr.bf16.mxu0 0
    %1178 = vmatpush2.bf16.msra.mxu0 %v945
    %1179 = vmatprep.subr.bf16.mxu0 0
    %1180 = vmatpush2.bf16.msra.mxu0 %v944
    %1181 = vmatprep.subr.bf16.mxu0 0
    %1182 = vmatpush2.bf16.msra.mxu0 %v943
    %1183 = vmatprep.subr.bf16.mxu0 0
    %1184 = vmatpush2.bf16.msra.mxu0 %v942
    %1185 = vmatprep.subr.bf16.mxu0 0
    %1186 = vmatpush2.bf16.msra.mxu0 %v941
    %1187 = vmatprep.subr.bf16.mxu0 0
    %1188 = vmatpush2.bf16.msra.mxu0 %v940
    %1189 = vmatprep.mubr.bf16.mxu0 %v487
    %1190 = vmatmul.mubr.bf16.gmra.mxu0 %v486
    %v1191 = vpop.f32.mrf.mxu0
    %v1192 = vadd.f32 %v1095, %v1191
    %v1193 = vpop.f32.mrf.mxu0
    %v1194 = vpop.f32.mrf.mxu0
    %v1195 = vadd.f32 %v1098, %v1194
    %v1196 = vpop.f32.mrf.mxu0
    %1197 = vmatprep.mubr.bf16.mxu0 %v496
    %1198 = vmatmul.mubr.bf16.gmra.mxu0 %v495
    %v1199 = vpop.f32.mrf.mxu0
    %v1200 = vadd.f32 %v1103, %v1199
    %v1201 = vpop.f32.mrf.mxu0
    %v1202 = vpop.f32.mrf.mxu0
    %v1203 = vadd.f32 %v1106, %v1202
    %v1204 = vpop.f32.mrf.mxu0
    %1205 = vmatprep.mubr.bf16.mxu0 %v505
    %1206 = vmatmul.mubr.bf16.gmra.mxu0 %v504
    %v1207 = vpop.f32.mrf.mxu0
    %v1208 = vadd.f32 %v1111, %v1207
    %v1209 = vpop.f32.mrf.mxu0
    %v1210 = vpop.f32.mrf.mxu0
    %v1211 = vadd.f32 %v1114, %v1210
    %v1212 = vpop.f32.mrf.mxu0
    %1213 = vmatprep.mubr.bf16.mxu0 %v514
    %1214 = vmatmul.mubr.bf16.gmra.mxu0 %v513
    %v1215 = vpop.f32.mrf.mxu0
    %v1216 = vadd.f32 %v1119, %v1215
    %v1217 = vpop.f32.mrf.mxu0
    %v1218 = vpop.f32.mrf.mxu0
    %v1219 = vadd.f32 %v1122, %v1218
    %v1220 = vpop.f32.mrf.mxu0
    %1221 = vmatprep.mubr.bf16.mxu0 %v523
    %1222 = vmatmul.mubr.bf16.gmra.mxu0 %v522
    %v1223 = vpop.f32.mrf.mxu0
    %v1224 = vadd.f32 %v1127, %v1223
    %v1225 = vpop.f32.mrf.mxu0
    %v1226 = vpop.f32.mrf.mxu0
    %v1227 = vadd.f32 %v1130, %v1226
    %v1228 = vpop.f32.mrf.mxu0
    %1229 = vmatprep.mubr.bf16.mxu0 %v532
    %1230 = vmatmul.mubr.bf16.gmra.mxu0 %v531
    %v1231 = vpop.f32.mrf.mxu0
    %v1232 = vadd.f32 %v1135, %v1231
    %v1233 = vpop.f32.mrf.mxu0
    %v1234 = vpop.f32.mrf.mxu0
    %v1235 = vadd.f32 %v1138, %v1234
    %v1236 = vpop.f32.mrf.mxu0
    %1237 = vmatprep.mubr.bf16.mxu0 %v541
    %1238 = vmatmul.mubr.bf16.gmra.mxu0 %v540
    %v1239 = vpop.f32.mrf.mxu0
    %v1240 = vadd.f32 %v1143, %v1239
    %v1241 = vpop.f32.mrf.mxu0
    %v1242 = vpop.f32.mrf.mxu0
    %v1243 = vadd.f32 %v1146, %v1242
    %v1244 = vpop.f32.mrf.mxu0
    %1245 = vmatprep.mubr.bf16.mxu0 %v550
    %1246 = vmatmul.mubr.bf16.gmra.mxu0 %v549
    %v1247 = vpop.f32.mrf.mxu0
    %v1248 = vadd.f32 %v1151, %v1247
    %v1249 = vpop.f32.mrf.mxu0
    %v1250 = vpop.f32.mrf.mxu0
    %v1251 = vadd.f32 %v1154, %v1250
    %v1252 = vpop.f32.mrf.mxu0
    %1253 = vdwg.mxu0
    %1254 = vmatprep.subr.bf16.mxu0 0
    %1255 = vmatpush1.bf16.msra.mxu0 %v955
    %1256 = vmatprep.subr.bf16.mxu0 0
    %1257 = vmatpush1.bf16.msra.mxu0 %v954
    %1258 = vmatprep.subr.bf16.mxu0 0
    %1259 = vmatpush1.bf16.msra.mxu0 %v953
    %1260 = vmatprep.subr.bf16.mxu0 0
    %1261 = vmatpush1.bf16.msra.mxu0 %v952
    %1262 = vmatprep.subr.bf16.mxu0 0
    %1263 = vmatpush1.bf16.msra.mxu0 %v951
    %1264 = vmatprep.subr.bf16.mxu0 0
    %1265 = vmatpush1.bf16.msra.mxu0 %v950
    %1266 = vmatprep.subr.bf16.mxu0 0
    %1267 = vmatpush1.bf16.msra.mxu0 %v949
    %1268 = vmatprep.subr.bf16.mxu0 0
    %1269 = vmatpush1.bf16.msra.mxu0 %v948
    %1270 = vmatprep.subr.bf16.mxu0 0
    %1271 = vmatpush2.bf16.msra.mxu0 %v963
    %1272 = vmatprep.subr.bf16.mxu0 0
    %1273 = vmatpush2.bf16.msra.mxu0 %v962
    %1274 = vmatprep.subr.bf16.mxu0 0
    %1275 = vmatpush2.bf16.msra.mxu0 %v961
    %1276 = vmatprep.subr.bf16.mxu0 0
    %1277 = vmatpush2.bf16.msra.mxu0 %v960
    %1278 = vmatprep.subr.bf16.mxu0 0
    %1279 = vmatpush2.bf16.msra.mxu0 %v959
    %1280 = vmatprep.subr.bf16.mxu0 0
    %1281 = vmatpush2.bf16.msra.mxu0 %v958
    %1282 = vmatprep.subr.bf16.mxu0 0
    %1283 = vmatpush2.bf16.msra.mxu0 %v957
    %1284 = vmatprep.subr.bf16.mxu0 0
    %1285 = vmatpush2.bf16.msra.mxu0 %v956
    %1286 = vmatprep.mubr.bf16.mxu0 %v489
    %1287 = vmatmul.mubr.bf16.gmra.mxu0 %v488
    %v1288 = vpop.f32.mrf.mxu0
    %v1289 = vadd.f32 %v1192, %v1288
    %v1290 = vpop.f32.mrf.mxu0
    %v1291 = vpop.f32.mrf.mxu0
    %v1292 = vadd.f32 %v1195, %v1291
    %v1293 = vpop.f32.mrf.mxu0
    %1294 = vmatprep.mubr.bf16.mxu0 %v498
    %1295 = vmatmul.mubr.bf16.gmra.mxu0 %v497
    %v1296 = vpop.f32.mrf.mxu0
    %v1297 = vadd.f32 %v1200, %v1296
    %v1298 = vpop.f32.mrf.mxu0
    %v1299 = vpop.f32.mrf.mxu0
    %v1300 = vadd.f32 %v1203, %v1299
    %v1301 = vpop.f32.mrf.mxu0
    %1302 = vmatprep.mubr.bf16.mxu0 %v507
    %1303 = vmatmul.mubr.bf16.gmra.mxu0 %v506
    %v1304 = vpop.f32.mrf.mxu0
    %v1305 = vadd.f32 %v1208, %v1304
    %v1306 = vpop.f32.mrf.mxu0
    %v1307 = vpop.f32.mrf.mxu0
    %v1308 = vadd.f32 %v1211, %v1307
    %v1309 = vpop.f32.mrf.mxu0
    %1310 = vmatprep.mubr.bf16.mxu0 %v516
    %1311 = vmatmul.mubr.bf16.gmra.mxu0 %v515
    %v1312 = vpop.f32.mrf.mxu0
    %v1313 = vadd.f32 %v1216, %v1312
    %v1314 = vpop.f32.mrf.mxu0
    %v1315 = vpop.f32.mrf.mxu0
    %v1316 = vadd.f32 %v1219, %v1315
    %v1317 = vpop.f32.mrf.mxu0
    %1318 = vmatprep.mubr.bf16.mxu0 %v525
    %1319 = vmatmul.mubr.bf16.gmra.mxu0 %v524
    %v1320 = vpop.f32.mrf.mxu0
    %v1321 = vadd.f32 %v1224, %v1320
    %v1322 = vpop.f32.mrf.mxu0
    %v1323 = vpop.f32.mrf.mxu0
    %v1324 = vadd.f32 %v1227, %v1323
    %v1325 = vpop.f32.mrf.mxu0
    %1326 = vmatprep.mubr.bf16.mxu0 %v534
    %1327 = vmatmul.mubr.bf16.gmra.mxu0 %v533
    %v1328 = vpop.f32.mrf.mxu0
    %v1329 = vadd.f32 %v1232, %v1328
    %v1330 = vpop.f32.mrf.mxu0
    %v1331 = vpop.f32.mrf.mxu0
    %v1332 = vadd.f32 %v1235, %v1331
    %v1333 = vpop.f32.mrf.mxu0
    %1334 = vmatprep.mubr.bf16.mxu0 %v543
    %1335 = vmatmul.mubr.bf16.gmra.mxu0 %v542
    %v1336 = vpop.f32.mrf.mxu0
    %v1337 = vadd.f32 %v1240, %v1336
    %v1338 = vpop.f32.mrf.mxu0
    %v1339 = vpop.f32.mrf.mxu0
    %v1340 = vadd.f32 %v1243, %v1339
    %v1341 = vpop.f32.mrf.mxu0
    %1342 = vmatprep.mubr.bf16.mxu0 %v552
    %1343 = vmatmul.mubr.bf16.gmra.mxu0 %v551
    %v1344 = vpop.f32.mrf.mxu0
    %v1345 = vadd.f32 %v1248, %v1344
    %v1346 = vpop.f32.mrf.mxu0
    %v1347 = vpop.f32.mrf.mxu0
    %v1348 = vadd.f32 %v1251, %v1347
    %v1349 = vpop.f32.mrf.mxu0
    %1350 = vdwg.mxu0
    %1351 = vmatprep.subr.bf16.mxu0 0
    %1352 = vmatpush1.bf16.msra.mxu0 %v971
    %1353 = vmatprep.subr.bf16.mxu0 0
    %1354 = vmatpush1.bf16.msra.mxu0 %v970
    %1355 = vmatprep.subr.bf16.mxu0 0
    %1356 = vmatpush1.bf16.msra.mxu0 %v969
    %1357 = vmatprep.subr.bf16.mxu0 0
    %1358 = vmatpush1.bf16.msra.mxu0 %v968
    %1359 = vmatprep.subr.bf16.mxu0 0
    %1360 = vmatpush1.bf16.msra.mxu0 %v967
    %1361 = vmatprep.subr.bf16.mxu0 0
    %1362 = vmatpush1.bf16.msra.mxu0 %v966
    %1363 = vmatprep.subr.bf16.mxu0 0
    %1364 = vmatpush1.bf16.msra.mxu0 %v965
    %1365 = vmatprep.subr.bf16.mxu0 0
    %1366 = vmatpush1.bf16.msra.mxu0 %v964
    %1367 = vmatprep.subr.bf16.mxu0 0
    %1368 = vmatpush2.bf16.msra.mxu0 %v979
    %1369 = vmatprep.subr.bf16.mxu0 0
    %1370 = vmatpush2.bf16.msra.mxu0 %v978
    %1371 = vmatprep.subr.bf16.mxu0 0
    %1372 = vmatpush2.bf16.msra.mxu0 %v977
    %1373 = vmatprep.subr.bf16.mxu0 0
    %1374 = vmatpush2.bf16.msra.mxu0 %v976
    %1375 = vmatprep.subr.bf16.mxu0 0
    %1376 = vmatpush2.bf16.msra.mxu0 %v975
    %1377 = vmatprep.subr.bf16.mxu0 0
    %1378 = vmatpush2.bf16.msra.mxu0 %v974
    %1379 = vmatprep.subr.bf16.mxu0 0
    %1380 = vmatpush2.bf16.msra.mxu0 %v973
    %1381 = vmatprep.subr.bf16.mxu0 0
    %1382 = vmatpush2.bf16.msra.mxu0 %v972
    %1383 = vmatprep.mubr.bf16.mxu0 %v491
    %1384 = vmatmul.mubr.bf16.gmra.mxu0 %v490
    %v1385 = vpop.f32.mrf.mxu0
    %v1386 = vadd.f32 %v1289, %v1385
    %v1387 = vpop.f32.mrf.mxu0
    %v1388 = vpop.f32.mrf.mxu0
    %v1389 = vadd.f32 %v1292, %v1388
    %v1390 = vpop.f32.mrf.mxu0
    %1391 = vmatprep.mubr.bf16.mxu0 %v500
    %1392 = vmatmul.mubr.bf16.gmra.mxu0 %v499
    %v1393 = vpop.f32.mrf.mxu0
    %v1394 = vadd.f32 %v1297, %v1393
    %v1395 = vpop.f32.mrf.mxu0
    %v1396 = vpop.f32.mrf.mxu0
    %v1397 = vadd.f32 %v1300, %v1396
    %v1398 = vpop.f32.mrf.mxu0
    %1399 = vmatprep.mubr.bf16.mxu0 %v509
    %1400 = vmatmul.mubr.bf16.gmra.mxu0 %v508
    %v1401 = vpop.f32.mrf.mxu0
    %v1402 = vadd.f32 %v1305, %v1401
    %v1403 = vpop.f32.mrf.mxu0
    %v1404 = vpop.f32.mrf.mxu0
    %v1405 = vadd.f32 %v1308, %v1404
    %v1406 = vpop.f32.mrf.mxu0
    %1407 = vmatprep.mubr.bf16.mxu0 %v518
    %1408 = vmatmul.mubr.bf16.gmra.mxu0 %v517
    %v1409 = vpop.f32.mrf.mxu0
    %v1410 = vadd.f32 %v1313, %v1409
    %v1411 = vpop.f32.mrf.mxu0
    %v1412 = vpop.f32.mrf.mxu0
    %v1413 = vadd.f32 %v1316, %v1412
    %v1414 = vpop.f32.mrf.mxu0
    %1415 = vmatprep.mubr.bf16.mxu0 %v527
    %1416 = vmatmul.mubr.bf16.gmra.mxu0 %v526
    %v1417 = vpop.f32.mrf.mxu0
    %v1418 = vadd.f32 %v1321, %v1417
    %v1419 = vpop.f32.mrf.mxu0
    %v1420 = vpop.f32.mrf.mxu0
    %v1421 = vadd.f32 %v1324, %v1420
    %v1422 = vpop.f32.mrf.mxu0
    %1423 = vmatprep.mubr.bf16.mxu0 %v536
    %1424 = vmatmul.mubr.bf16.gmra.mxu0 %v535
    %v1425 = vpop.f32.mrf.mxu0
    %v1426 = vadd.f32 %v1329, %v1425
    %v1427 = vpop.f32.mrf.mxu0
    %v1428 = vpop.f32.mrf.mxu0
    %v1429 = vadd.f32 %v1332, %v1428
    %v1430 = vpop.f32.mrf.mxu0
    %1431 = vmatprep.mubr.bf16.mxu0 %v545
    %1432 = vmatmul.mubr.bf16.gmra.mxu0 %v544
    %v1433 = vpop.f32.mrf.mxu0
    %v1434 = vadd.f32 %v1337, %v1433
    %v1435 = vpop.f32.mrf.mxu0
    %v1436 = vpop.f32.mrf.mxu0
    %v1437 = vadd.f32 %v1340, %v1436
    %v1438 = vpop.f32.mrf.mxu0
    %1439 = vmatprep.mubr.bf16.mxu0 %v554
    %1440 = vmatmul.mubr.bf16.gmra.mxu0 %v553
    %v1441 = vpop.f32.mrf.mxu0
    %v1442 = vadd.f32 %v1345, %v1441
    %v1443 = vpop.f32.mrf.mxu0
    %v1444 = vpop.f32.mrf.mxu0
    %v1445 = vadd.f32 %v1348, %v1444
    %v1446 = vpop.f32.mrf.mxu0
    %1447 = vdwg.mxu0
    %1448 = vmatprep.subr.bf16.mxu0 0
    %1449 = vmatpush1.bf16.msra.mxu0 %v987
    %1450 = vmatprep.subr.bf16.mxu0 0
    %1451 = vmatpush1.bf16.msra.mxu0 %v986
    %1452 = vmatprep.subr.bf16.mxu0 0
    %1453 = vmatpush1.bf16.msra.mxu0 %v985
    %1454 = vmatprep.subr.bf16.mxu0 0
    %1455 = vmatpush1.bf16.msra.mxu0 %v984
    %1456 = vmatprep.subr.bf16.mxu0 0
    %1457 = vmatpush1.bf16.msra.mxu0 %v983
    %1458 = vmatprep.subr.bf16.mxu0 0
    %1459 = vmatpush1.bf16.msra.mxu0 %v982
    %1460 = vmatprep.subr.bf16.mxu0 0
    %1461 = vmatpush1.bf16.msra.mxu0 %v981
    %1462 = vmatprep.subr.bf16.mxu0 0
    %1463 = vmatpush1.bf16.msra.mxu0 %v980
    %1464 = vmatprep.subr.bf16.mxu0 0
    %1465 = vmatpush2.bf16.msra.mxu0 0
    %1466 = vmatprep.subr.bf16.mxu0 0
    %1467 = vmatpush2.bf16.msra.mxu0 0
    %1468 = vmatprep.subr.bf16.mxu0 0
    %1469 = vmatpush2.bf16.msra.mxu0 0
    %1470 = vmatprep.subr.bf16.mxu0 0
    %1471 = vmatpush2.bf16.msra.mxu0 0
    %1472 = vmatprep.subr.bf16.mxu0 0
    %1473 = vmatpush2.bf16.msra.mxu0 0
    %1474 = vmatprep.subr.bf16.mxu0 0
    %1475 = vmatpush2.bf16.msra.mxu0 0
    %1476 = vmatprep.subr.bf16.mxu0 0
    %1477 = vmatpush2.bf16.msra.mxu0 0
    %1478 = vmatprep.subr.bf16.mxu0 0
    %1479 = vmatpush2.bf16.msra.mxu0 0
    %1480 = vmatprep.mubr.bf16.mxu0 0
    %1481 = vmatmul.mubr.bf16.gmra.mxu0 %v492
    %v1482 = vpop.f32.mrf.mxu0
    %v1483 = vadd.f32 %v1386, %v1482
    %v1484 = vpop.f32.mrf.mxu0
    %v1485 = vpop.f32.mrf.mxu0
    %v1486 = vadd.f32 %v1389, %v1485
    %v1487 = vpop.f32.mrf.mxu0
    %1488 = vmatprep.mubr.bf16.mxu0 0
    %1489 = vmatmul.mubr.bf16.gmra.mxu0 %v501
    %v1490 = vpop.f32.mrf.mxu0
    %v1491 = vadd.f32 %v1394, %v1490
    %v1492 = vpop.f32.mrf.mxu0
    %v1493 = vpop.f32.mrf.mxu0
    %v1494 = vadd.f32 %v1397, %v1493
    %v1495 = vpop.f32.mrf.mxu0
    %1496 = vmatprep.mubr.bf16.mxu0 0
    %1497 = vmatmul.mubr.bf16.gmra.mxu0 %v510
    %v1498 = vpop.f32.mrf.mxu0
    %v1499 = vadd.f32 %v1402, %v1498
    %v1500 = vpop.f32.mrf.mxu0
    %v1501 = vpop.f32.mrf.mxu0
    %v1502 = vadd.f32 %v1405, %v1501
    %v1503 = vpop.f32.mrf.mxu0
    %1504 = vmatprep.mubr.bf16.mxu0 0
    %1505 = vmatmul.mubr.bf16.gmra.mxu0 %v519
    %v1506 = vpop.f32.mrf.mxu0
    %v1507 = vadd.f32 %v1410, %v1506
    %v1508 = vpop.f32.mrf.mxu0
    %v1509 = vpop.f32.mrf.mxu0
    %v1510 = vadd.f32 %v1413, %v1509
    %v1511 = vpop.f32.mrf.mxu0
    %1512 = vmatprep.mubr.bf16.mxu0 0
    %1513 = vmatmul.mubr.bf16.gmra.mxu0 %v528
    %v1514 = vpop.f32.mrf.mxu0
    %v1515 = vadd.f32 %v1418, %v1514
    %v1516 = vpop.f32.mrf.mxu0
    %v1517 = vpop.f32.mrf.mxu0
    %v1518 = vadd.f32 %v1421, %v1517
    %v1519 = vpop.f32.mrf.mxu0
    %1520 = vmatprep.mubr.bf16.mxu0 0
    %1521 = vmatmul.mubr.bf16.gmra.mxu0 %v537
    %v1522 = vpop.f32.mrf.mxu0
    %v1523 = vadd.f32 %v1426, %v1522
    %v1524 = vpop.f32.mrf.mxu0
    %v1525 = vpop.f32.mrf.mxu0
    %v1526 = vadd.f32 %v1429, %v1525
    %v1527 = vpop.f32.mrf.mxu0
    %1528 = vmatprep.mubr.bf16.mxu0 0
    %1529 = vmatmul.mubr.bf16.gmra.mxu0 %v546
    %v1530 = vpop.f32.mrf.mxu0
    %v1531 = vadd.f32 %v1434, %v1530
    %v1532 = vpop.f32.mrf.mxu0
    %v1533 = vpop.f32.mrf.mxu0
    %v1534 = vadd.f32 %v1437, %v1533
    %v1535 = vpop.f32.mrf.mxu0
    %1536 = vmatprep.mubr.bf16.mxu0 0
    %1537 = vmatmul.mubr.bf16.gmra.mxu0 %v555
    %v1538 = vpop.f32.mrf.mxu0
    %v1539 = vadd.f32 %v1442, %v1538
    %v1540 = vpop.f32.mrf.mxu0
    %v1541 = vpop.f32.mrf.mxu0
    %v1542 = vadd.f32 %v1445, %v1541
    %v1543 = vpop.f32.mrf.mxu0
    %1544 = vdwg.mxu0
    %1545 = vst [vmem:[%s3] sm:$0xff] %v1483
    %1546 = vst [vmem:[%s3 + $0x8] sm:$0xff] %v1486
    %1547 = vst [vmem:[%s3 + $0x10] sm:$0xff] %v1491
    %1548 = vst [vmem:[%s3 + $0x18] sm:$0xff] %v1494
    %1549 = vst [vmem:[%s3 + $0x20] sm:$0xff] %v1499
    %1550 = vst [vmem:[%s3 + $0x28] sm:$0xff] %v1502
    %1551 = vst [vmem:[%s3 + $0x30] sm:$0xff] %v1507
    %1552 = vst [vmem:[%s3 + $0x38] sm:$0xff] %v1510
    %1553 = vst [vmem:[%s3 + $0x40] sm:$0xff] %v1515
    %1554 = vst [vmem:[%s3 + $0x48] sm:$0xff] %v1518
    %1555 = vst [vmem:[%s3 + $0x50] sm:$0xff] %v1523
    %1556 = vst [vmem:[%s3 + $0x58] sm:$0xff] %v1526
    %1557 = vst [vmem:[%s3 + $0x60] sm:$0xff] %v1531
    %1558 = vst [vmem:[%s3 + $0x68] sm:$0xff] %v1534
    %1559 = vst [vmem:[%s3 + $0x70] sm:$0xff] %v1539
    %1560 = vst [vmem:[%s3 + $0x78] sm:$0xff] %v1542
    // Predicated region
    $region18: #{kernel_predictor_forward.3} parent=1 // pred_check
      _
    $region19: #{kernel_predictor_forward.3} parent=1 // pred_check_branch
      %1562 = sbr.rel (0) target = $region21
    $region20: #{kernel_predictor_forward.3} parent=1 // pred_region
      _
    $region21: #{kernel_predictor_forward.3} parent=1 // pred_fallthru
      _
    // Predicated region
    $region22: #{kernel_predictor_forward.3} parent=1 // pred_check
      _
    $region23: #{kernel_predictor_forward.3} parent=1 // pred_check_branch
      %1564 = sbr.rel (0) target = $region25
    $region24: #{kernel_predictor_forward.3} parent=1 // pred_region
      _
    $region25: #{kernel_predictor_forward.3} parent=1 // pred_fallthru
      _
    %1565 = vsyncpa [#allocation3], 1

</llo_original>
